<compile_context>
chip_gen: v7x
topology: tpu7x:2x2x1
jax: 0.10.0
libtpu: 0.0.40
codegen_flags: <defaults>
</compile_context>

<pallas_src>
import functools

import jax
import jax.numpy as jnp
from jax.experimental import pallas as pl
from jax.experimental.pallas import tpu as pltpu

INPUT_DIM = 135
HIDDEN_DIM = 512
OUTPUT_DIM = 29

PAD_IN = 256    # zero-padded contraction dim for layer 1 (lane multiple)
PAD_OUT = 128   # zero-padded lane-dense output width for the head


def _round_up(n: int, m: int) -> int:
    return ((n + m - 1) // m) * m


def _mlp_kernel(x_ref, w1_ref, b1_ref, w2_ref, b2_ref, w3_ref, b3_ref, o_ref):
    # Layer 1: (TB, 256)bf16 @ (256, 512)bf16 -> f32, bias + ReLU in f32.
    h1 = jnp.dot(x_ref[...], w1_ref[...], preferred_element_type=jnp.float32)
    h1 = jnp.maximum(h1 + b1_ref[...], 0.0)
    # Layer 2: cast activations to bf16 so the MXU runs its native bf16 path.
    h2 = jnp.dot(h1.astype(w2_ref.dtype), w2_ref[...],
                 preferred_element_type=jnp.float32)
    h2 = jnp.maximum(h2 + b2_ref[...], 0.0)
    # Head: (TB, 512)bf16 @ (512, 128)bf16 -> f32 (padded lanes are exact zeros).
    out = jnp.dot(h2.astype(w3_ref.dtype), w3_ref[...],
                  preferred_element_type=jnp.float32) + b3_ref[...]
    o_ref[...] = out.astype(o_ref.dtype)


def retarget_net_forward(x, prepared_params):
    """x: (B, 135) float32 -> (B, 29) float32.

    prepared_params: output of prepare_params() — bf16, padded weights.
    """
    w1, b1, w2, b2, w3, b3 = prepared_params
    B = x.shape[0]

    # Batch tile: multiple of 8 (sublane), capped at 256 (v7x-safe, fills MXU).
    TB = min(256, _round_up(B, 8))
    B_pad = _round_up(B, TB)
    num_tiles = pl.cdiv(B_pad, TB)

    # Pad the input once: batch -> B_pad rows, features 135 -> 256 (zeros), bf16.
    x_p = jnp.zeros((B_pad, PAD_IN), jnp.float32)
    x_p = x_p.at[:B, :INPUT_DIM].set(x).astype(jnp.bfloat16)

    const = lambda shape: pl.BlockSpec(shape, lambda i: tuple(0 for _ in shape))

    flops = 2 * B_pad * (PAD_IN * HIDDEN_DIM + HIDDEN_DIM * HIDDEN_DIM
                         + HIDDEN_DIM * PAD_OUT)
    bytes_accessed = (x_p.size * 2 + w1.size * 2 + w2.size * 2 + w3.size * 2
                      + b1.size * 4 + b2.size * 4 + b3.size * 4
                      + B_pad * PAD_OUT * 4)

    out_padded = pl.pallas_call(
        _mlp_kernel,
        out_shape=jax.ShapeDtypeStruct((B_pad, PAD_OUT), jnp.float32),
        grid_spec=pltpu.PrefetchScalarGridSpec(
            num_scalar_prefetch=0,
            grid=(num_tiles,),
            in_specs=[
                pl.BlockSpec((TB, PAD_IN), lambda i: (i, 0)),     # x tile per step
                const((PAD_IN, HIDDEN_DIM)),                      # w1 (resident)
                const((1, HIDDEN_DIM)),                           # b1
                const((HIDDEN_DIM, HIDDEN_DIM)),                  # w2
                const((1, HIDDEN_DIM)),                           # b2
                const((HIDDEN_DIM, PAD_OUT)),                     # w3 (padded)
                const((1, PAD_OUT)),                              # b3 (padded)
            ],
            out_specs=pl.BlockSpec((TB, PAD_OUT), lambda i: (i, 0)),
        ),
        compiler_params=pltpu.CompilerParams(
            dimension_semantics=("parallel",),
        ),
        cost_estimate=pl.CostEstimate(
            flops=flops, transcendentals=0, bytes_accessed=bytes_accessed),
    )(x_p, w1, b1, w2, b2, w3, b3)

    return out_padded[:B, :OUTPUT_DIM]


def init_params(key):
    """Deterministic PyTorch-style init, stored (in, out), f32, unpadded."""
    ks = jax.random.split(key, 6)

    def linear(kw, kb, fan_in, fan_out):
        bound = 1.0 / jnp.sqrt(float(fan_in))
        w = jax.random.uniform(kw, (fan_in, fan_out), jnp.float32, -bound, bound)
        b = jax.random.uniform(kb, (1, fan_out), jnp.float32, -bound, bound)
        return w, b

    w1, b1 = linear(ks[0], ks[1], INPUT_DIM, HIDDEN_DIM)
    w2, b2 = linear(ks[2], ks[3], HIDDEN_DIM, HIDDEN_DIM)
    w3, b3 = linear(ks[4], ks[5], HIDDEN_DIM, OUTPUT_DIM)
    return (w1, b1, w2, b2, w3, b3)


def prepare_params(params):
    """One-time prep: pad layer-1 K (135->256) and head N (29->128), cast W to bf16."""
    w1, b1, w2, b2, w3, b3 = params
    w1p = jnp.zeros((PAD_IN, HIDDEN_DIM), jnp.float32).at[:INPUT_DIM, :].set(w1)
    w3p = jnp.zeros((HIDDEN_DIM, PAD_OUT), jnp.float32).at[:, :OUTPUT_DIM].set(w3)
    b3p = jnp.zeros((1, PAD_OUT), jnp.float32).at[:, :OUTPUT_DIM].set(b3)
    return (w1p.astype(jnp.bfloat16), b1,
            w2.astype(jnp.bfloat16), b2,
            w3p.astype(jnp.bfloat16), b3p)


def reference_forward_f32(x, params):
    """Pure f32 reference (PyTorch-equivalent math)."""
    w1, b1, w2, b2, w3, b3 = params
    h = jnp.maximum(x @ w1 + b1, 0.0)
    h = jnp.maximum(h @ w2 + b2, 0.0)
    return h @ w3 + b3


def reference_forward_bf16(x, params):
    """Reference mirroring the kernel's quantization (bf16 operands, f32 accum)."""
    w1, b1, w2, b2, w3, b3 = params
    xb = x.astype(jnp.bfloat16)
    h = jnp.dot(xb, w1.astype(jnp.bfloat16), preferred_element_type=jnp.float32) + b1
    h = jnp.maximum(h, 0.0)
    h = jnp.dot(h.astype(jnp.bfloat16), w2.astype(jnp.bfloat16),
                preferred_element_type=jnp.float32) + b2
    h = jnp.maximum(h, 0.0)
    return jnp.dot(h.astype(jnp.bfloat16), w3.astype(jnp.bfloat16),
                   preferred_element_type=jnp.float32) + b3


if __name__ == "__main__":
    key = jax.random.PRNGKey(0)
    k_params, k_x = jax.random.split(key)

    params = init_params(k_params)
    prepared = prepare_params(params)

    batch = 8
    x = jax.random.normal(k_x, (batch, INPUT_DIM), dtype=jnp.float32)

    fwd = jax.jit(retarget_net_forward)
    y = jax.block_until_ready(fwd(x, prepared))

    assert y.shape == (batch, OUTPUT_DIM)

    # Tight check against a reference with identical bf16 quantization.
    y_bf16_ref = reference_forward_bf16(x, params)
    assert jnp.allclose(y, y_bf16_ref, atol=2e-3, rtol=2e-3), (
        jnp.max(jnp.abs(y - y_bf16_ref)))

    # Loose check against full-f32 math (bf16 weight/activation rounding noise).
    y_f32_ref = reference_forward_f32(x, params)
    assert jnp.allclose(y, y_f32_ref, atol=5e-2, rtol=5e-2), (
        jnp.max(jnp.abs(y - y_f32_ref)))

    print("KERNEL_OK")
</pallas_src>

<mosaic_0001>
module attributes {stable_mosaic.version = 11 : i64} {
  func.func @_mlp_kernel(%arg0: i32, %arg1: memref<8x256xbf16, #tpu.memory_space<vmem>>, %arg2: memref<256x512xbf16, #tpu.memory_space<vmem>>, %arg3: memref<1x512xf32, #tpu.memory_space<vmem>>, %arg4: memref<512x512xbf16, #tpu.memory_space<vmem>>, %arg5: memref<1x512xf32, #tpu.memory_space<vmem>>, %arg6: memref<512x128xbf16, #tpu.memory_space<vmem>>, %arg7: memref<1x128xf32, #tpu.memory_space<vmem>>, %arg8: memref<8x128xf32, #tpu.memory_space<vmem>>) attributes {dimension_semantics = [#tpu.dimension_semantics<parallel>], iteration_bounds = array<i64: 1>, scalar_prefetch = 0 : i64, scratch_operands = 0 : i64, tpu.core_type = #tpu.core_type<tc>, window_params = [{transform_indices = @transform_0, window_bounds = array<i64: 8, 256>}, {pipeline_mode = #tpu.pipeline_mode<synchronous>, transform_indices = @transform_1, window_bounds = array<i64: 256, 512>}, {pipeline_mode = #tpu.pipeline_mode<synchronous>, transform_indices = @transform_2, window_bounds = array<i64: 1, 512>}, {pipeline_mode = #tpu.pipeline_mode<synchronous>, transform_indices = @transform_3, window_bounds = array<i64: 512, 512>}, {pipeline_mode = #tpu.pipeline_mode<synchronous>, transform_indices = @transform_4, window_bounds = array<i64: 1, 512>}, {pipeline_mode = #tpu.pipeline_mode<synchronous>, transform_indices = @transform_5, window_bounds = array<i64: 512, 128>}, {pipeline_mode = #tpu.pipeline_mode<synchronous>, transform_indices = @transform_6, window_bounds = array<i64: 1, 128>}, {transform_indices = @transform_7, window_bounds = array<i64: 8, 128>}]} {
    %c0 = arith.constant 0 : index
    %c0_0 = arith.constant 0 : index
    %0 = vector.load %arg1[%c0, %c0_0] : memref<8x256xbf16, #tpu.memory_space<vmem>>, vector<8x256xbf16>
    %c0_1 = arith.constant 0 : index
    %c0_2 = arith.constant 0 : index
    %1 = vector.load %arg2[%c0_1, %c0_2] : memref<256x512xbf16, #tpu.memory_space<vmem>>, vector<256x512xbf16>
    %cst = arith.constant dense<0.000000e+00> : vector<8x512xf32>
    %2 = tpu.matmul %0, %1, %cst {dimension_numbers = #tpu.dot_dimension_numbers<[1], [0], [0], [1], [0, 0, 1, 1], [], []>} : vector<8x256xbf16>, vector<256x512xbf16>, vector<8x512xf32> -> vector<8x512xf32>
    %c0_3 = arith.constant 0 : index
    %c0_4 = arith.constant 0 : index
    %3 = vector.load %arg3[%c0_3, %c0_4] : memref<1x512xf32, #tpu.memory_space<vmem>>, vector<1x512xf32>
    %4 = vector.broadcast %3 : vector<1x512xf32> to vector<8x512xf32>
    %5 = arith.addf %2, %4 : vector<8x512xf32>
    %cst_5 = arith.constant 0.000000e+00 : f32
    %6 = vector.broadcast %cst_5 : f32 to vector<8x512xf32>
    %7 = arith.maximumf %5, %6 : vector<8x512xf32>
    %8 = arith.truncf %7 : vector<8x512xf32> to vector<8x512xbf16>
    %c0_6 = arith.constant 0 : index
    %c0_7 = arith.constant 0 : index
    %9 = vector.load %arg4[%c0_6, %c0_7] : memref<512x512xbf16, #tpu.memory_space<vmem>>, vector<512x512xbf16>
    %cst_8 = arith.constant dense<0.000000e+00> : vector<8x512xf32>
    %10 = tpu.matmul %8, %9, %cst_8 {dimension_numbers = #tpu.dot_dimension_numbers<[1], [0], [0], [1], [0, 0, 1, 1], [], []>} : vector<8x512xbf16>, vector<512x512xbf16>, vector<8x512xf32> -> vector<8x512xf32>
    %c0_9 = arith.constant 0 : index
    %c0_10 = arith.constant 0 : index
    %11 = vector.load %arg5[%c0_9, %c0_10] : memref<1x512xf32, #tpu.memory_space<vmem>>, vector<1x512xf32>
    %12 = vector.broadcast %11 : vector<1x512xf32> to vector<8x512xf32>
    %13 = arith.addf %10, %12 : vector<8x512xf32>
    %cst_11 = arith.constant 0.000000e+00 : f32
    %14 = vector.broadcast %cst_11 : f32 to vector<8x512xf32>
    %15 = arith.maximumf %13, %14 : vector<8x512xf32>
    %16 = arith.truncf %15 : vector<8x512xf32> to vector<8x512xbf16>
    %c0_12 = arith.constant 0 : index
    %c0_13 = arith.constant 0 : index
    %17 = vector.load %arg6[%c0_12, %c0_13] : memref<512x128xbf16, #tpu.memory_space<vmem>>, vector<512x128xbf16>
    %cst_14 = arith.constant dense<0.000000e+00> : vector<8x128xf32>
    %18 = tpu.matmul %16, %17, %cst_14 {dimension_numbers = #tpu.dot_dimension_numbers<[1], [0], [0], [1], [0, 0, 1, 1], [], []>} : vector<8x512xbf16>, vector<512x128xbf16>, vector<8x128xf32> -> vector<8x128xf32>
    %c0_15 = arith.constant 0 : index
    %c0_16 = arith.constant 0 : index
    %19 = vector.load %arg7[%c0_15, %c0_16] : memref<1x128xf32, #tpu.memory_space<vmem>>, vector<1x128xf32>
    %20 = vector.broadcast %19 : vector<1x128xf32> to vector<8x128xf32>
    %21 = arith.addf %18, %20 : vector<8x128xf32>
    %c0_17 = arith.constant 0 : index
    %c0_18 = arith.constant 0 : index
    %22 = vector.load %arg8[%c0_17, %c0_18] : memref<8x128xf32, #tpu.memory_space<vmem>>, vector<8x128xf32>
    tpu.vector_store %arg8[%c0_17, %c0_18], %21 {strides = array<i32>} : memref<8x128xf32, #tpu.memory_space<vmem>>, vector<8x128xf32>,
    return
  }
  func.func @transform_0(%arg0: i32) -> (i32, i32) {
    %c0_i32 = arith.constant 0 : i32
    %c0_i32_0 = arith.constant 0 : i32
    return %arg0, %c0_i32 : i32, i32
  }
  func.func @transform_1(%arg0: i32) -> (i32, i32) {
    %c0_i32 = arith.constant 0 : i32
    %c0_i32_0 = arith.constant 0 : i32
    %c0_i32_1 = arith.constant 0 : i32
    return %c0_i32, %c0_i32_0 : i32, i32
  }
  func.func @transform_2(%arg0: i32) -> (i32, i32) {
    %c0_i32 = arith.constant 0 : i32
    %c0_i32_0 = arith.constant 0 : i32
    %c0_i32_1 = arith.constant 0 : i32
    return %c0_i32, %c0_i32_0 : i32, i32
  }
  func.func @transform_3(%arg0: i32) -> (i32, i32) {
    %c0_i32 = arith.constant 0 : i32
    %c0_i32_0 = arith.constant 0 : i32
    %c0_i32_1 = arith.constant 0 : i32
    return %c0_i32, %c0_i32_0 : i32, i32
  }
  func.func @transform_4(%arg0: i32) -> (i32, i32) {
    %c0_i32 = arith.constant 0 : i32
    %c0_i32_0 = arith.constant 0 : i32
    %c0_i32_1 = arith.constant 0 : i32
    return %c0_i32, %c0_i32_0 : i32, i32
  }
  func.func @transform_5(%arg0: i32) -> (i32, i32) {
    %c0_i32 = arith.constant 0 : i32
    %c0_i32_0 = arith.constant 0 : i32
    %c0_i32_1 = arith.constant 0 : i32
    return %c0_i32, %c0_i32_0 : i32, i32
  }
  func.func @transform_6(%arg0: i32) -> (i32, i32) {
    %c0_i32 = arith.constant 0 : i32
    %c0_i32_0 = arith.constant 0 : i32
    %c0_i32_1 = arith.constant 0 : i32
    return %c0_i32, %c0_i32_0 : i32, i32
  }
  func.func @transform_7(%arg0: i32) -> (i32, i32) {
    %c0_i32 = arith.constant 0 : i32
    %c0_i32_0 = arith.constant 0 : i32
    return %arg0, %c0_i32 : i32, i32
  }
}

</mosaic_0001>

<llo_original>
// kernel: retarget_net_forward.1
$region0: #{retarget_net_forward.1}
  #allocation0 [shape = 'u32[]', space=smem, size = 0x4, offset = 0x4, fixed_abs, tag = 'smem constant byte address 0x4 - core index']
  #allocation1 [shape = 'u32[144,128]{1,0:T(1,128)}', space=vmem, size = 0x12000, scoped, tag = 'internal scratch']
  %s0 = inlined_call_operand.vmem [shape: bf16[8,256], index: 0, kind: input, shape index: {}]
  %s1 = inlined_call_operand.hbm [shape: bf16[256,512], index: 1, kind: input, shape index: {}]
  %s2 = inlined_call_operand.vmem [shape: f32[1,512], index: 2, kind: input, shape index: {}]
  %s3 = inlined_call_operand.hbm [shape: bf16[512,512], index: 3, kind: input, shape index: {}]
  %s4 = inlined_call_operand.vmem [shape: f32[1,512], index: 4, kind: input, shape index: {}]
  %s5 = inlined_call_operand.hbm [shape: bf16[512,128], index: 5, kind: input, shape index: {}]
  %s6 = inlined_call_operand.vmem [shape: f32[1,128], index: 6, kind: input, shape index: {}]
  %s7 = inlined_call_operand.hbm [shape: f32[8,128], index: 7, kind: output, shape index: {}]
  %s8 = sld [smem:[#allocation0]]
  $region50: #{retarget_net_forward.1} parent=0
    _
  %s10 = ssub.s32 1, %s8
  %s11 = scalar_select 0, %s10, %s8
  $region1: #{retarget_net_forward.1} parent=0
    #allocation2 [shape = 'u8[262144]{0}', space=vmem, size = 0x40000, scoped, tag = 'input window, operand 1, single buffered']
    #allocation3 [shape = 's32[1]{0}', space=sflag, size = 0x4, scoped, tag = 'scoped memory for retarget_net_forward.1']
    #allocation4 [shape = 's32[1]{0}', space=sflag, size = 0x4, scoped, tag = 'scoped memory for retarget_net_forward.1']
    #allocation5 [shape = 'u8[524288]{0}', space=vmem, size = 0x80000, scoped, tag = 'input window, operand 3, single buffered']
    #allocation6 [shape = 's32[1]{0}', space=sflag, size = 0x4, scoped, tag = 'scoped memory for retarget_net_forward.1']
    #allocation7 [shape = 'u8[131072]{0}', space=vmem, size = 0x20000, scoped, tag = 'input window, operand 5, single buffered']
    #allocation8 [shape = 'u8[4096]{0}', space=vmem, size = 0x1000, scoped, tag = 'output window, operand 0, single buffered']
    %12 = vsyncpa [#allocation3], 0
    %13 = vsyncpa [#allocation6], 0
    %14 = vsyncpa [#allocation4], 0
    // Predicated region
    $region2: #{retarget_net_forward.1} parent=1 // pred_check
      _
    $region3: #{retarget_net_forward.1} parent=1 // pred_check_branch
      %16 = sbr.rel (0) target = $region5
    $region4: #{retarget_net_forward.1} parent=1 // pred_region
      _
    $region5: #{retarget_net_forward.1} parent=1 // pred_fallthru
      _
    // Predicated region
    $region6: #{retarget_net_forward.1} parent=1 // pred_check
      _
    $region7: #{retarget_net_forward.1} parent=1 // pred_check_branch
      %18 = sbr.rel (0) target = $region9
    $region8: #{retarget_net_forward.1} parent=1 // pred_region
      %s20 = ssub.s32 8192, 8192
      %21 = vsyncadd [#allocation3], %s20
      %s22 = sshll.u32 [#allocation2], 4
      %s23 = int_to_ptr.vmem [resolvable:$true] %s22
      %28 = dma.hbm_to_vmem [thread:$0]  %s1, 8192, %s23, [#allocation3], 256, 256, 16
    $region9: #{retarget_net_forward.1} parent=1 // pred_fallthru
      _
    // Predicated region
    $region10: #{retarget_net_forward.1} parent=1 // pred_check
      _
    $region11: #{retarget_net_forward.1} parent=1 // pred_check_branch
      %30 = sbr.rel (0) target = $region13
    $region12: #{retarget_net_forward.1} parent=1 // pred_region
      _
    $region13: #{retarget_net_forward.1} parent=1 // pred_fallthru
      _
    // Predicated region
    $region14: #{retarget_net_forward.1} parent=1 // pred_check
      _
    $region15: #{retarget_net_forward.1} parent=1 // pred_check_branch
      %32 = sbr.rel (0) target = $region17
    $region16: #{retarget_net_forward.1} parent=1 // pred_region
      %s34 = ssub.s32 16384, 16384
      %35 = vsyncadd [#allocation6], %s34
      %s36 = sshll.u32 [#allocation5], 4
      %s37 = int_to_ptr.vmem [resolvable:$true] %s36
      %42 = dma.hbm_to_vmem [thread:$0]  %s3, 16384, %s37, [#allocation6], 256, 256, 16
    $region17: #{retarget_net_forward.1} parent=1 // pred_fallthru
      _
    // Predicated region
    $region18: #{retarget_net_forward.1} parent=1 // pred_check
      _
    $region19: #{retarget_net_forward.1} parent=1 // pred_check_branch
      %44 = sbr.rel (0) target = $region21
    $region20: #{retarget_net_forward.1} parent=1 // pred_region
      _
    $region21: #{retarget_net_forward.1} parent=1 // pred_fallthru
      _
    // Predicated region
    $region22: #{retarget_net_forward.1} parent=1 // pred_check
      _
    $region23: #{retarget_net_forward.1} parent=1 // pred_check_branch
      %46 = sbr.rel (0) target = $region25
    $region24: #{retarget_net_forward.1} parent=1 // pred_region
      %s48 = ssub.s32 4096, 4096
      %49 = vsyncadd [#allocation6], %s48
      %s50 = sshll.u32 [#allocation7], 4
      %s51 = int_to_ptr.vmem [resolvable:$true] %s50
      %56 = dma.hbm_to_vmem [thread:$0]  %s5, 4096, %s51, [#allocation6], 64, 64, 4
    $region25: #{retarget_net_forward.1} parent=1 // pred_fallthru
      _
    // Predicated region
    $region26: #{retarget_net_forward.1} parent=1 // pred_check
      _
    $region27: #{retarget_net_forward.1} parent=1 // pred_check_branch
      %58 = sbr.rel (0) target = $region29
    $region28: #{retarget_net_forward.1} parent=1 // pred_region
      _
    $region29: #{retarget_net_forward.1} parent=1 // pred_fallthru
      _
    // Predicated region
    $region30: #{retarget_net_forward.1} parent=1 // pred_check
      _
    $region31: #{retarget_net_forward.1} parent=1 // pred_check_branch
      %60 = sbr.rel (0) target = $region33
    $region32: #{retarget_net_forward.1} parent=1 // pred_region
      %61 = dma.done [#allocation3], 8192
    $region33: #{retarget_net_forward.1} parent=1 // pred_fallthru
      _
    // Predicated region
    $region34: #{retarget_net_forward.1} parent=1 // pred_check
      _
    $region35: #{retarget_net_forward.1} parent=1 // pred_check_branch
      %63 = sbr.rel (0) target = $region37
    $region36: #{retarget_net_forward.1} parent=1 // pred_region
      %64 = dma.done [#allocation6], 16384
    $region37: #{retarget_net_forward.1} parent=1 // pred_fallthru
      _
    // Predicated region
    $region38: #{retarget_net_forward.1} parent=1 // pred_check
      _
    $region39: #{retarget_net_forward.1} parent=1 // pred_check_branch
      %66 = sbr.rel (0) target = $region41
    $region40: #{retarget_net_forward.1} parent=1 // pred_region
      %67 = dma.done [#allocation6], 4096
    $region41: #{retarget_net_forward.1} parent=1 // pred_fallthru
      _
    %v69 = vld [vmem:[%s0] sm:$0xff]
    %v70 = vld [vmem:[#allocation2] sm:$0xff]
    %v71 = vld [vmem:[#allocation2 + $0x8] sm:$0xff]
    %v72 = vld [vmem:[#allocation2 + $0x10] sm:$0xff]
    %v73 = vld [vmem:[#allocation2 + $0x18] sm:$0xff]
    %v74 = vld [vmem:[#allocation2 + $0x20] sm:$0xff]
    %v75 = vld [vmem:[#allocation2 + $0x28] sm:$0xff]
    %v76 = vld [vmem:[#allocation2 + $0x30] sm:$0xff]
    %v77 = vld [vmem:[#allocation2 + $0x38] sm:$0xff]
    %v78 = vld [vmem:[#allocation2 + $0x40] sm:$0xff]
    %v79 = vld [vmem:[#allocation2 + $0x48] sm:$0xff]
    %v80 = vld [vmem:[#allocation2 + $0x50] sm:$0xff]
    %v81 = vld [vmem:[#allocation2 + $0x58] sm:$0xff]
    %v82 = vld [vmem:[#allocation2 + $0x60] sm:$0xff]
    %v83 = vld [vmem:[#allocation2 + $0x68] sm:$0xff]
    %v84 = vld [vmem:[#allocation2 + $0x70] sm:$0xff]
    %v85 = vld [vmem:[#allocation2 + $0x78] sm:$0xff]
    %v86 = vld [vmem:[#allocation2 + $0x80] sm:$0xff]
    %v87 = vld [vmem:[#allocation2 + $0x88] sm:$0xff]
    %v88 = vld [vmem:[#allocation2 + $0x90] sm:$0xff]
    %v89 = vld [vmem:[#allocation2 + $0x98] sm:$0xff]
    %v90 = vld [vmem:[#allocation2 + $0xa0] sm:$0xff]
    %v91 = vld [vmem:[#allocation2 + $0xa8] sm:$0xff]
    %v92 = vld [vmem:[#allocation2 + $0xb0] sm:$0xff]
    %v93 = vld [vmem:[#allocation2 + $0xb8] sm:$0xff]
    %v94 = vld [vmem:[#allocation2 + $0xc0] sm:$0xff]
    %v95 = vld [vmem:[#allocation2 + $0xc8] sm:$0xff]
    %v96 = vld [vmem:[#allocation2 + $0xd0] sm:$0xff]
    %v97 = vld [vmem:[#allocation2 + $0xd8] sm:$0xff]
    %v98 = vld [vmem:[#allocation2 + $0xe0] sm:$0xff]
    %v99 = vld [vmem:[#allocation2 + $0xe8] sm:$0xff]
    %v100 = vld [vmem:[#allocation2 + $0xf0] sm:$0xff]
    %v101 = vld [vmem:[#allocation2 + $0xf8] sm:$0xff]
    %v102 = vld [vmem:[#allocation2 + $0x100] sm:$0xff]
    %v103 = vld [vmem:[#allocation2 + $0x108] sm:$0xff]
    %v104 = vld [vmem:[#allocation2 + $0x110] sm:$0xff]
    %v105 = vld [vmem:[#allocation2 + $0x118] sm:$0xff]
    %v106 = vld [vmem:[#allocation2 + $0x120] sm:$0xff]
    %v107 = vld [vmem:[#allocation2 + $0x128] sm:$0xff]
    %v108 = vld [vmem:[#allocation2 + $0x130] sm:$0xff]
    %v109 = vld [vmem:[#allocation2 + $0x138] sm:$0xff]
    %v110 = vld [vmem:[#allocation2 + $0x140] sm:$0xff]
    %v111 = vld [vmem:[#allocation2 + $0x148] sm:$0xff]
    %v112 = vld [vmem:[#allocation2 + $0x150] sm:$0xff]
    %v113 = vld [vmem:[#allocation2 + $0x158] sm:$0xff]
    %v114 = vld [vmem:[#allocation2 + $0x160] sm:$0xff]
    %v115 = vld [vmem:[#allocation2 + $0x168] sm:$0xff]
    %v116 = vld [vmem:[#allocation2 + $0x170] sm:$0xff]
    %v117 = vld [vmem:[#allocation2 + $0x178] sm:$0xff]
    %v118 = vld [vmem:[#allocation2 + $0x180] sm:$0xff]
    %v119 = vld [vmem:[#allocation2 + $0x188] sm:$0xff]
    %v120 = vld [vmem:[#allocation2 + $0x190] sm:$0xff]
    %v121 = vld [vmem:[#allocation2 + $0x198] sm:$0xff]
    %v122 = vld [vmem:[#allocation2 + $0x1a0] sm:$0xff]
    %v123 = vld [vmem:[#allocation2 + $0x1a8] sm:$0xff]
    %v124 = vld [vmem:[#allocation2 + $0x1b0] sm:$0xff]
    %v125 = vld [vmem:[#allocation2 + $0x1b8] sm:$0xff]
    %v126 = vld [vmem:[#allocation2 + $0x1c0] sm:$0xff]
    %v127 = vld [vmem:[#allocation2 + $0x1c8] sm:$0xff]
    %v128 = vld [vmem:[#allocation2 + $0x1d0] sm:$0xff]
    %v129 = vld [vmem:[#allocation2 + $0x1d8] sm:$0xff]
    %v130 = vld [vmem:[#allocation2 + $0x1e0] sm:$0xff]
    %v131 = vld [vmem:[#allocation2 + $0x1e8] sm:$0xff]
    %v132 = vld [vmem:[#allocation2 + $0x1f0] sm:$0xff]
    %v133 = vld [vmem:[#allocation2 + $0x1f8] sm:$0xff]
    %v134 = vld [vmem:[%s2] sm:$0xf]
    %v136 = vlaneseq
    %v137 = vshrl.u32 %v136, 7
    %v138 = vsub.s32 0, %v137
    %v139 = vrot.slane %v134, %v138
    %v140 = vlaneseq
    %v141 = vshrl.u32 %v140, 7
    %v142 = vsub.s32 1, %v141
    %v143 = vrot.slane %v134, %v142
    %v144 = vlaneseq
    %v145 = vshrl.u32 %v144, 7
    %v146 = vsub.s32 2, %v145
    %v147 = vrot.slane %v134, %v146
    %v148 = vlaneseq
    %v149 = vshrl.u32 %v148, 7
    %v150 = vsub.s32 3, %v149
    %v151 = vrot.slane %v134, %v150
    %v157 = vunpack.c.l.b16 %v69
    %v158 = vunpack.c.h.b16 %v69
    %v159 = vpack.c.b16 %v157, %v157
    %v160 = vpack.c.b16 %v158, %v158
    %v227 = vunpack.c.l.b16 %v70
    %v228 = vunpack.c.h.b16 %v70
    %v229 = vunpack.c.l.b16 %v71
    %v230 = vunpack.c.h.b16 %v71
    %v231 = vunpack.c.l.b16 %v72
    %v232 = vunpack.c.h.b16 %v72
    %v233 = vunpack.c.l.b16 %v73
    %v234 = vunpack.c.h.b16 %v73
    %v235 = vunpack.c.l.b16 %v74
    %v236 = vunpack.c.h.b16 %v74
    %v237 = vunpack.c.l.b16 %v75
    %v238 = vunpack.c.h.b16 %v75
    %v239 = vunpack.c.l.b16 %v76
    %v240 = vunpack.c.h.b16 %v76
    %v241 = vunpack.c.l.b16 %v77
    %v242 = vunpack.c.h.b16 %v77
    %v243 = vunpack.c.l.b16 %v78
    %v244 = vunpack.c.h.b16 %v78
    %v245 = vunpack.c.l.b16 %v79
    %v246 = vunpack.c.h.b16 %v79
    %v247 = vunpack.c.l.b16 %v80
    %v248 = vunpack.c.h.b16 %v80
    %v249 = vunpack.c.l.b16 %v81
    %v250 = vunpack.c.h.b16 %v81
    %v251 = vunpack.c.l.b16 %v82
    %v252 = vunpack.c.h.b16 %v82
    %v253 = vunpack.c.l.b16 %v83
    %v254 = vunpack.c.h.b16 %v83
    %v255 = vunpack.c.l.b16 %v84
    %v256 = vunpack.c.h.b16 %v84
    %v257 = vunpack.c.l.b16 %v85
    %v258 = vunpack.c.h.b16 %v85
    %v259 = vunpack.c.l.b16 %v86
    %v260 = vunpack.c.h.b16 %v86
    %v261 = vunpack.c.l.b16 %v87
    %v262 = vunpack.c.h.b16 %v87
    %v263 = vunpack.c.l.b16 %v88
    %v264 = vunpack.c.h.b16 %v88
    %v265 = vunpack.c.l.b16 %v89
    %v266 = vunpack.c.h.b16 %v89
    %v267 = vunpack.c.l.b16 %v90
    %v268 = vunpack.c.h.b16 %v90
    %v269 = vunpack.c.l.b16 %v91
    %v270 = vunpack.c.h.b16 %v91
    %v271 = vunpack.c.l.b16 %v92
    %v272 = vunpack.c.h.b16 %v92
    %v273 = vunpack.c.l.b16 %v93
    %v274 = vunpack.c.h.b16 %v93
    %v275 = vunpack.c.l.b16 %v94
    %v276 = vunpack.c.h.b16 %v94
    %v277 = vunpack.c.l.b16 %v95
    %v278 = vunpack.c.h.b16 %v95
    %v279 = vunpack.c.l.b16 %v96
    %v280 = vunpack.c.h.b16 %v96
    %v281 = vunpack.c.l.b16 %v97
    %v282 = vunpack.c.h.b16 %v97
    %v283 = vunpack.c.l.b16 %v98
    %v284 = vunpack.c.h.b16 %v98
    %v285 = vunpack.c.l.b16 %v99
    %v286 = vunpack.c.h.b16 %v99
    %v287 = vunpack.c.l.b16 %v100
    %v288 = vunpack.c.h.b16 %v100
    %v289 = vunpack.c.l.b16 %v101
    %v290 = vunpack.c.h.b16 %v101
    %v291 = vunpack.c.l.b16 %v102
    %v292 = vunpack.c.h.b16 %v102
    %v293 = vunpack.c.l.b16 %v103
    %v294 = vunpack.c.h.b16 %v103
    %v295 = vunpack.c.l.b16 %v104
    %v296 = vunpack.c.h.b16 %v104
    %v297 = vunpack.c.l.b16 %v105
    %v298 = vunpack.c.h.b16 %v105
    %v299 = vunpack.c.l.b16 %v106
    %v300 = vunpack.c.h.b16 %v106
    %v301 = vunpack.c.l.b16 %v107
    %v302 = vunpack.c.h.b16 %v107
    %v303 = vunpack.c.l.b16 %v108
    %v304 = vunpack.c.h.b16 %v108
    %v305 = vunpack.c.l.b16 %v109
    %v306 = vunpack.c.h.b16 %v109
    %v307 = vunpack.c.l.b16 %v110
    %v308 = vunpack.c.h.b16 %v110
    %v309 = vunpack.c.l.b16 %v111
    %v310 = vunpack.c.h.b16 %v111
    %v311 = vunpack.c.l.b16 %v112
    %v312 = vunpack.c.h.b16 %v112
    %v313 = vunpack.c.l.b16 %v113
    %v314 = vunpack.c.h.b16 %v113
    %v315 = vunpack.c.l.b16 %v114
    %v316 = vunpack.c.h.b16 %v114
    %v317 = vunpack.c.l.b16 %v115
    %v318 = vunpack.c.h.b16 %v115
    %v319 = vunpack.c.l.b16 %v116
    %v320 = vunpack.c.h.b16 %v116
    %v321 = vunpack.c.l.b16 %v117
    %v322 = vunpack.c.h.b16 %v117
    %v323 = vunpack.c.l.b16 %v118
    %v324 = vunpack.c.h.b16 %v118
    %v325 = vunpack.c.l.b16 %v119
    %v326 = vunpack.c.h.b16 %v119
    %v327 = vunpack.c.l.b16 %v120
    %v328 = vunpack.c.h.b16 %v120
    %v329 = vunpack.c.l.b16 %v121
    %v330 = vunpack.c.h.b16 %v121
    %v331 = vunpack.c.l.b16 %v122
    %v332 = vunpack.c.h.b16 %v122
    %v333 = vunpack.c.l.b16 %v123
    %v334 = vunpack.c.h.b16 %v123
    %v335 = vunpack.c.l.b16 %v124
    %v336 = vunpack.c.h.b16 %v124
    %v337 = vunpack.c.l.b16 %v125
    %v338 = vunpack.c.h.b16 %v125
    %v339 = vunpack.c.l.b16 %v126
    %v340 = vunpack.c.h.b16 %v126
    %v341 = vunpack.c.l.b16 %v127
    %v342 = vunpack.c.h.b16 %v127
    %v343 = vunpack.c.l.b16 %v128
    %v344 = vunpack.c.h.b16 %v128
    %v345 = vunpack.c.l.b16 %v129
    %v346 = vunpack.c.h.b16 %v129
    %v347 = vunpack.c.l.b16 %v130
    %v348 = vunpack.c.h.b16 %v130
    %v349 = vunpack.c.l.b16 %v131
    %v350 = vunpack.c.h.b16 %v131
    %v351 = vunpack.c.l.b16 %v132
    %v352 = vunpack.c.h.b16 %v132
    %v353 = vunpack.c.l.b16 %v133
    %v354 = vunpack.c.h.b16 %v133
    %v355 = vpack.c.b16 %v231, %v227
    %v356 = vpack.c.b16 %v232, %v228
    %v357 = vpack.c.b16 %v233, %v229
    %v358 = vpack.c.b16 %v234, %v230
    %v359 = vpack.c.b16 %v239, %v235
    %v360 = vpack.c.b16 %v240, %v236
    %v361 = vpack.c.b16 %v241, %v237
    %v362 = vpack.c.b16 %v242, %v238
    %v363 = vpack.c.b16 %v247, %v243
    %v364 = vpack.c.b16 %v248, %v244
    %v365 = vpack.c.b16 %v249, %v245
    %v366 = vpack.c.b16 %v250, %v246
    %v367 = vpack.c.b16 %v255, %v251
    %v368 = vpack.c.b16 %v256, %v252
    %v369 = vpack.c.b16 %v257, %v253
    %v370 = vpack.c.b16 %v258, %v254
    %v371 = vpack.c.b16 %v263, %v259
    %v372 = vpack.c.b16 %v264, %v260
    %v373 = vpack.c.b16 %v265, %v261
    %v374 = vpack.c.b16 %v266, %v262
    %v375 = vpack.c.b16 %v271, %v267
    %v376 = vpack.c.b16 %v272, %v268
    %v377 = vpack.c.b16 %v273, %v269
    %v378 = vpack.c.b16 %v274, %v270
    %v379 = vpack.c.b16 %v279, %v275
    %v380 = vpack.c.b16 %v280, %v276
    %v381 = vpack.c.b16 %v281, %v277
    %v382 = vpack.c.b16 %v282, %v278
    %v383 = vpack.c.b16 %v287, %v283
    %v384 = vpack.c.b16 %v288, %v284
    %v385 = vpack.c.b16 %v289, %v285
    %v386 = vpack.c.b16 %v290, %v286
    %v387 = vpack.c.b16 %v295, %v291
    %v388 = vpack.c.b16 %v296, %v292
    %v389 = vpack.c.b16 %v297, %v293
    %v390 = vpack.c.b16 %v298, %v294
    %v391 = vpack.c.b16 %v303, %v299
    %v392 = vpack.c.b16 %v304, %v300
    %v393 = vpack.c.b16 %v305, %v301
    %v394 = vpack.c.b16 %v306, %v302
    %v395 = vpack.c.b16 %v311, %v307
    %v396 = vpack.c.b16 %v312, %v308
    %v397 = vpack.c.b16 %v313, %v309
    %v398 = vpack.c.b16 %v314, %v310
    %v399 = vpack.c.b16 %v319, %v315
    %v400 = vpack.c.b16 %v320, %v316
    %v401 = vpack.c.b16 %v321, %v317
    %v402 = vpack.c.b16 %v322, %v318
    %v403 = vpack.c.b16 %v327, %v323
    %v404 = vpack.c.b16 %v328, %v324
    %v405 = vpack.c.b16 %v329, %v325
    %v406 = vpack.c.b16 %v330, %v326
    %v407 = vpack.c.b16 %v335, %v331
    %v408 = vpack.c.b16 %v336, %v332
    %v409 = vpack.c.b16 %v337, %v333
    %v410 = vpack.c.b16 %v338, %v334
    %v411 = vpack.c.b16 %v343, %v339
    %v412 = vpack.c.b16 %v344, %v340
    %v413 = vpack.c.b16 %v345, %v341
    %v414 = vpack.c.b16 %v346, %v342
    %v415 = vpack.c.b16 %v351, %v347
    %v416 = vpack.c.b16 %v352, %v348
    %v417 = vpack.c.b16 %v353, %v349
    %v418 = vpack.c.b16 %v354, %v350
    %483 = vmatprep.subr.bf16.mxu0 %v356
    %484 = vmatpush1.bf16.msra.mxu0 %v355
    %485 = vmatprep.subr.bf16.mxu0 %v360
    %486 = vmatpush1.bf16.msra.mxu0 %v359
    %487 = vmatprep.subr.bf16.mxu0 %v364
    %488 = vmatpush1.bf16.msra.mxu0 %v363
    %489 = vmatprep.subr.bf16.mxu0 %v368
    %490 = vmatpush1.bf16.msra.mxu0 %v367
    %491 = vmatprep.subr.bf16.mxu0 %v372
    %492 = vmatpush1.bf16.msra.mxu0 %v371
    %493 = vmatprep.subr.bf16.mxu0 %v376
    %494 = vmatpush1.bf16.msra.mxu0 %v375
    %495 = vmatprep.subr.bf16.mxu0 %v380
    %496 = vmatpush1.bf16.msra.mxu0 %v379
    %497 = vmatprep.subr.bf16.mxu0 %v384
    %498 = vmatpush1.bf16.msra.mxu0 %v383
    %499 = vmatprep.subr.bf16.mxu0 %v388
    %500 = vmatpush1.bf16.msra.mxu0 %v387
    %501 = vmatprep.subr.bf16.mxu0 %v392
    %502 = vmatpush1.bf16.msra.mxu0 %v391
    %503 = vmatprep.subr.bf16.mxu0 %v396
    %504 = vmatpush1.bf16.msra.mxu0 %v395
    %505 = vmatprep.subr.bf16.mxu0 %v400
    %506 = vmatpush1.bf16.msra.mxu0 %v399
    %507 = vmatprep.subr.bf16.mxu0 %v404
    %508 = vmatpush1.bf16.msra.mxu0 %v403
    %509 = vmatprep.subr.bf16.mxu0 %v408
    %510 = vmatpush1.bf16.msra.mxu0 %v407
    %511 = vmatprep.subr.bf16.mxu0 %v412
    %512 = vmatpush1.bf16.msra.mxu0 %v411
    %513 = vmatprep.subr.bf16.mxu0 %v416
    %514 = vmatpush1.bf16.msra.mxu0 %v415
    %515 = vmatprep.mubr.bf16.mxu0 %v160
    %516 = vmatmul.mubr.bf16.gmra.mrb[0].mxu0 %v159
    %v517 = vpop.f32.mrb[0].mxu0
    %v518 = vadd.f32 %v139, %v517
    %v519 = vpop.f32.mrb[0].mxu0
    %v520 = vadd.f32 %v143, %v519
    %v521 = vpop.f32.mrb[0].mxu0
    %v522 = vpop.f32.mrb[0].mxu0
    %523 = vdwg.mxu0
    %524 = vmatprep.subr.bf16.mxu0 %v358
    %525 = vmatpush1.bf16.msra.mxu0 %v357
    %526 = vmatprep.subr.bf16.mxu0 %v362
    %527 = vmatpush1.bf16.msra.mxu0 %v361
    %528 = vmatprep.subr.bf16.mxu0 %v366
    %529 = vmatpush1.bf16.msra.mxu0 %v365
    %530 = vmatprep.subr.bf16.mxu0 %v370
    %531 = vmatpush1.bf16.msra.mxu0 %v369
    %532 = vmatprep.subr.bf16.mxu0 %v374
    %533 = vmatpush1.bf16.msra.mxu0 %v373
    %534 = vmatprep.subr.bf16.mxu0 %v378
    %535 = vmatpush1.bf16.msra.mxu0 %v377
    %536 = vmatprep.subr.bf16.mxu0 %v382
    %537 = vmatpush1.bf16.msra.mxu0 %v381
    %538 = vmatprep.subr.bf16.mxu0 %v386
    %539 = vmatpush1.bf16.msra.mxu0 %v385
    %540 = vmatprep.subr.bf16.mxu0 %v390
    %541 = vmatpush1.bf16.msra.mxu0 %v389
    %542 = vmatprep.subr.bf16.mxu0 %v394
    %543 = vmatpush1.bf16.msra.mxu0 %v393
    %544 = vmatprep.subr.bf16.mxu0 %v398
    %545 = vmatpush1.bf16.msra.mxu0 %v397
    %546 = vmatprep.subr.bf16.mxu0 %v402
    %547 = vmatpush1.bf16.msra.mxu0 %v401
    %548 = vmatprep.subr.bf16.mxu0 %v406
    %549 = vmatpush1.bf16.msra.mxu0 %v405
    %550 = vmatprep.subr.bf16.mxu0 %v410
    %551 = vmatpush1.bf16.msra.mxu0 %v409
    %552 = vmatprep.subr.bf16.mxu0 %v414
    %553 = vmatpush1.bf16.msra.mxu0 %v413
    %554 = vmatprep.subr.bf16.mxu0 %v418
    %555 = vmatpush1.bf16.msra.mxu0 %v417
    %556 = vmatprep.mubr.bf16.mxu0 %v160
    %557 = vmatmul.mubr.bf16.gmra.mrb[0].mxu0 %v159
    %v558 = vpop.f32.mrb[0].mxu0
    %v559 = vadd.f32 %v147, %v558
    %v560 = vpop.f32.mrb[0].mxu0
    %v561 = vadd.f32 %v151, %v560
    %v562 = vpop.f32.mrb[0].mxu0
    %v563 = vpop.f32.mrb[0].mxu0
    %564 = vdwg.mxu0
    %v565 = vmax.f32 %v518, 0.0
    %v566 = vmax.f32 %v520, 0.0
    %v567 = vmax.f32 %v559, 0.0
    %v568 = vmax.f32 %v561, 0.0
    %v569 = vpack.c.bf16 %v565, %v565
    %v570 = vpack.c.bf16 %v566, %v566
    %v571 = vpack.c.bf16 %v567, %v567
    %v572 = vpack.c.bf16 %v568, %v568
    %v573 = vld [vmem:[#allocation5] sm:$0xff]
    %v574 = vld [vmem:[#allocation5 + $0x8] sm:$0xff]
    %v575 = vld [vmem:[#allocation5 + $0x10] sm:$0xff]
    %v576 = vld [vmem:[#allocation5 + $0x18] sm:$0xff]
    %v577 = vld [vmem:[#allocation5 + $0x20] sm:$0xff]
    %v578 = vld [vmem:[#allocation5 + $0x28] sm:$0xff]
    %v579 = vld [vmem:[#allocation5 + $0x30] sm:$0xff]
    %v580 = vld [vmem:[#allocation5 + $0x38] sm:$0xff]
    %v581 = vld [vmem:[#allocation5 + $0x40] sm:$0xff]
    %v582 = vld [vmem:[#allocation5 + $0x48] sm:$0xff]
    %v583 = vld [vmem:[#allocation5 + $0x50] sm:$0xff]
    %v584 = vld [vmem:[#allocation5 + $0x58] sm:$0xff]
    %v585 = vld [vmem:[#allocation5 + $0x60] sm:$0xff]
    %v586 = vld [vmem:[#allocation5 + $0x68] sm:$0xff]
    %v587 = vld [vmem:[#allocation5 + $0x70] sm:$0xff]
    %v588 = vld [vmem:[#allocation5 + $0x78] sm:$0xff]
    %v589 = vld [vmem:[#allocation5 + $0x80] sm:$0xff]
    %v590 = vld [vmem:[#allocation5 + $0x88] sm:$0xff]
    %v591 = vld [vmem:[#allocation5 + $0x90] sm:$0xff]
    %v592 = vld [vmem:[#allocation5 + $0x98] sm:$0xff]
    %v593 = vld [vmem:[#allocation5 + $0xa0] sm:$0xff]
    %v594 = vld [vmem:[#allocation5 + $0xa8] sm:$0xff]
    %v595 = vld [vmem:[#allocation5 + $0xb0] sm:$0xff]
    %v596 = vld [vmem:[#allocation5 + $0xb8] sm:$0xff]
    %v597 = vld [vmem:[#allocation5 + $0xc0] sm:$0xff]
    %v598 = vld [vmem:[#allocation5 + $0xc8] sm:$0xff]
    %v599 = vld [vmem:[#allocation5 + $0xd0] sm:$0xff]
    %v600 = vld [vmem:[#allocation5 + $0xd8] sm:$0xff]
    %v601 = vld [vmem:[#allocation5 + $0xe0] sm:$0xff]
    %v602 = vld [vmem:[#allocation5 + $0xe8] sm:$0xff]
    %v603 = vld [vmem:[#allocation5 + $0xf0] sm:$0xff]
    %v604 = vld [vmem:[#allocation5 + $0xf8] sm:$0xff]
    %v605 = vld [vmem:[#allocation5 + $0x100] sm:$0xff]
    %v606 = vld [vmem:[#allocation5 + $0x108] sm:$0xff]
    %v607 = vld [vmem:[#allocation5 + $0x110] sm:$0xff]
    %v608 = vld [vmem:[#allocation5 + $0x118] sm:$0xff]
    %v609 = vld [vmem:[#allocation5 + $0x120] sm:$0xff]
    %v610 = vld [vmem:[#allocation5 + $0x128] sm:$0xff]
    %v611 = vld [vmem:[#allocation5 + $0x130] sm:$0xff]
    %v612 = vld [vmem:[#allocation5 + $0x138] sm:$0xff]
    %v613 = vld [vmem:[#allocation5 + $0x140] sm:$0xff]
    %v614 = vld [vmem:[#allocation5 + $0x148] sm:$0xff]
    %v615 = vld [vmem:[#allocation5 + $0x150] sm:$0xff]
    %v616 = vld [vmem:[#allocation5 + $0x158] sm:$0xff]
    %v617 = vld [vmem:[#allocation5 + $0x160] sm:$0xff]
    %v618 = vld [vmem:[#allocation5 + $0x168] sm:$0xff]
    %v619 = vld [vmem:[#allocation5 + $0x170] sm:$0xff]
    %v620 = vld [vmem:[#allocation5 + $0x178] sm:$0xff]
    %v621 = vld [vmem:[#allocation5 + $0x180] sm:$0xff]
    %v622 = vld [vmem:[#allocation5 + $0x188] sm:$0xff]
    %v623 = vld [vmem:[#allocation5 + $0x190] sm:$0xff]
    %v624 = vld [vmem:[#allocation5 + $0x198] sm:$0xff]
    %v625 = vld [vmem:[#allocation5 + $0x1a0] sm:$0xff]
    %v626 = vld [vmem:[#allocation5 + $0x1a8] sm:$0xff]
    %v627 = vld [vmem:[#allocation5 + $0x1b0] sm:$0xff]
    %v628 = vld [vmem:[#allocation5 + $0x1b8] sm:$0xff]
    %v629 = vld [vmem:[#allocation5 + $0x1c0] sm:$0xff]
    %v630 = vld [vmem:[#allocation5 + $0x1c8] sm:$0xff]
    %v631 = vld [vmem:[#allocation5 + $0x1d0] sm:$0xff]
    %v632 = vld [vmem:[#allocation5 + $0x1d8] sm:$0xff]
    %v633 = vld [vmem:[#allocation5 + $0x1e0] sm:$0xff]
    %v634 = vld [vmem:[#allocation5 + $0x1e8] sm:$0xff]
    %v635 = vld [vmem:[#allocation5 + $0x1f0] sm:$0xff]
    %v636 = vld [vmem:[#allocation5 + $0x1f8] sm:$0xff]
    %v637 = vld [vmem:[#allocation5 + $0x200] sm:$0xff]
    %v638 = vld [vmem:[#allocation5 + $0x208] sm:$0xff]
    %v639 = vld [vmem:[#allocation5 + $0x210] sm:$0xff]
    %v640 = vld [vmem:[#allocation5 + $0x218] sm:$0xff]
    %v641 = vld [vmem:[#allocation5 + $0x220] sm:$0xff]
    %v642 = vld [vmem:[#allocation5 + $0x228] sm:$0xff]
    %v643 = vld [vmem:[#allocation5 + $0x230] sm:$0xff]
    %v644 = vld [vmem:[#allocation5 + $0x238] sm:$0xff]
    %v645 = vld [vmem:[#allocation5 + $0x240] sm:$0xff]
    %v646 = vld [vmem:[#allocation5 + $0x248] sm:$0xff]
    %v647 = vld [vmem:[#allocation5 + $0x250] sm:$0xff]
    %v648 = vld [vmem:[#allocation5 + $0x258] sm:$0xff]
    %v649 = vld [vmem:[#allocation5 + $0x260] sm:$0xff]
    %v650 = vld [vmem:[#allocation5 + $0x268] sm:$0xff]
    %v651 = vld [vmem:[#allocation5 + $0x270] sm:$0xff]
    %v652 = vld [vmem:[#allocation5 + $0x278] sm:$0xff]
    %v653 = vld [vmem:[#allocation5 + $0x280] sm:$0xff]
    %v654 = vld [vmem:[#allocation5 + $0x288] sm:$0xff]
    %v655 = vld [vmem:[#allocation5 + $0x290] sm:$0xff]
    %v656 = vld [vmem:[#allocation5 + $0x298] sm:$0xff]
    %v657 = vld [vmem:[#allocation5 + $0x2a0] sm:$0xff]
    %v658 = vld [vmem:[#allocation5 + $0x2a8] sm:$0xff]
    %v659 = vld [vmem:[#allocation5 + $0x2b0] sm:$0xff]
    %v660 = vld [vmem:[#allocation5 + $0x2b8] sm:$0xff]
    %v661 = vld [vmem:[#allocation5 + $0x2c0] sm:$0xff]
    %v662 = vld [vmem:[#allocation5 + $0x2c8] sm:$0xff]
    %v663 = vld [vmem:[#allocation5 + $0x2d0] sm:$0xff]
    %v664 = vld [vmem:[#allocation5 + $0x2d8] sm:$0xff]
    %v665 = vld [vmem:[#allocation5 + $0x2e0] sm:$0xff]
    %v666 = vld [vmem:[#allocation5 + $0x2e8] sm:$0xff]
    %v667 = vld [vmem:[#allocation5 + $0x2f0] sm:$0xff]
    %v668 = vld [vmem:[#allocation5 + $0x2f8] sm:$0xff]
    %v669 = vld [vmem:[#allocation5 + $0x300] sm:$0xff]
    %v670 = vld [vmem:[#allocation5 + $0x308] sm:$0xff]
    %v671 = vld [vmem:[#allocation5 + $0x310] sm:$0xff]
    %v672 = vld [vmem:[#allocation5 + $0x318] sm:$0xff]
    %v673 = vld [vmem:[#allocation5 + $0x320] sm:$0xff]
    %v674 = vld [vmem:[#allocation5 + $0x328] sm:$0xff]
    %v675 = vld [vmem:[#allocation5 + $0x330] sm:$0xff]
    %v676 = vld [vmem:[#allocation5 + $0x338] sm:$0xff]
    %v677 = vld [vmem:[#allocation5 + $0x340] sm:$0xff]
    %v678 = vld [vmem:[#allocation5 + $0x348] sm:$0xff]
    %v679 = vld [vmem:[#allocation5 + $0x350] sm:$0xff]
    %v680 = vld [vmem:[#allocation5 + $0x358] sm:$0xff]
    %v681 = vld [vmem:[#allocation5 + $0x360] sm:$0xff]
    %v682 = vld [vmem:[#allocation5 + $0x368] sm:$0xff]
    %v683 = vld [vmem:[#allocation5 + $0x370] sm:$0xff]
    %v684 = vld [vmem:[#allocation5 + $0x378] sm:$0xff]
    %v685 = vld [vmem:[#allocation5 + $0x380] sm:$0xff]
    %v686 = vld [vmem:[#allocation5 + $0x388] sm:$0xff]
    %v687 = vld [vmem:[#allocation5 + $0x390] sm:$0xff]
    %v688 = vld [vmem:[#allocation5 + $0x398] sm:$0xff]
    %v689 = vld [vmem:[#allocation5 + $0x3a0] sm:$0xff]
    %v690 = vld [vmem:[#allocation5 + $0x3a8] sm:$0xff]
    %v691 = vld [vmem:[#allocation5 + $0x3b0] sm:$0xff]
    %v692 = vld [vmem:[#allocation5 + $0x3b8] sm:$0xff]
    %v693 = vld [vmem:[#allocation5 + $0x3c0] sm:$0xff]
    %v694 = vld [vmem:[#allocation5 + $0x3c8] sm:$0xff]
    %v695 = vld [vmem:[#allocation5 + $0x3d0] sm:$0xff]
    %v696 = vld [vmem:[#allocation5 + $0x3d8] sm:$0xff]
    %v697 = vld [vmem:[#allocation5 + $0x3e0] sm:$0xff]
    %v698 = vld [vmem:[#allocation5 + $0x3e8] sm:$0xff]
    %v699 = vld [vmem:[#allocation5 + $0x3f0] sm:$0xff]
    %v700 = vld [vmem:[#allocation5 + $0x3f8] sm:$0xff]
    %v701 = vld [vmem:[%s4] sm:$0xf]
    %v703 = vlaneseq
    %v704 = vshrl.u32 %v703, 7
    %v705 = vsub.s32 0, %v704
    %v706 = vrot.slane %v701, %v705
    %v707 = vlaneseq
    %v708 = vshrl.u32 %v707, 7
    %v709 = vsub.s32 1, %v708
    %v710 = vrot.slane %v701, %v709
    %v711 = vlaneseq
    %v712 = vshrl.u32 %v711, 7
    %v713 = vsub.s32 2, %v712
    %v714 = vrot.slane %v701, %v713
    %v715 = vlaneseq
    %v716 = vshrl.u32 %v715, 7
    %v717 = vsub.s32 3, %v716
    %v718 = vrot.slane %v701, %v717
    %v851 = vunpack.c.l.b16 %v573
    %v852 = vunpack.c.h.b16 %v573
    %v853 = vunpack.c.l.b16 %v574
    %v854 = vunpack.c.h.b16 %v574
    %v855 = vunpack.c.l.b16 %v575
    %v856 = vunpack.c.h.b16 %v575
    %v857 = vunpack.c.l.b16 %v576
    %v858 = vunpack.c.h.b16 %v576
    %v859 = vunpack.c.l.b16 %v577
    %v860 = vunpack.c.h.b16 %v577
    %v861 = vunpack.c.l.b16 %v578
    %v862 = vunpack.c.h.b16 %v578
    %v863 = vunpack.c.l.b16 %v579
    %v864 = vunpack.c.h.b16 %v579
    %v865 = vunpack.c.l.b16 %v580
    %v866 = vunpack.c.h.b16 %v580
    %v867 = vunpack.c.l.b16 %v581
    %v868 = vunpack.c.h.b16 %v581
    %v869 = vunpack.c.l.b16 %v582
    %v870 = vunpack.c.h.b16 %v582
    %v871 = vunpack.c.l.b16 %v583
    %v872 = vunpack.c.h.b16 %v583
    %v873 = vunpack.c.l.b16 %v584
    %v874 = vunpack.c.h.b16 %v584
    %v875 = vunpack.c.l.b16 %v585
    %v876 = vunpack.c.h.b16 %v585
    %v877 = vunpack.c.l.b16 %v586
    %v878 = vunpack.c.h.b16 %v586
    %v879 = vunpack.c.l.b16 %v587
    %v880 = vunpack.c.h.b16 %v587
    %v881 = vunpack.c.l.b16 %v588
    %v882 = vunpack.c.h.b16 %v588
    %v883 = vunpack.c.l.b16 %v589
    %v884 = vunpack.c.h.b16 %v589
    %v885 = vunpack.c.l.b16 %v590
    %v886 = vunpack.c.h.b16 %v590
    %v887 = vunpack.c.l.b16 %v591
    %v888 = vunpack.c.h.b16 %v591
    %v889 = vunpack.c.l.b16 %v592
    %v890 = vunpack.c.h.b16 %v592
    %v891 = vunpack.c.l.b16 %v593
    %v892 = vunpack.c.h.b16 %v593
    %v893 = vunpack.c.l.b16 %v594
    %v894 = vunpack.c.h.b16 %v594
    %v895 = vunpack.c.l.b16 %v595
    %v896 = vunpack.c.h.b16 %v595
    %v897 = vunpack.c.l.b16 %v596
    %v898 = vunpack.c.h.b16 %v596
    %v899 = vunpack.c.l.b16 %v597
    %v900 = vunpack.c.h.b16 %v597
    %v901 = vunpack.c.l.b16 %v598
    %v902 = vunpack.c.h.b16 %v598
    %v903 = vunpack.c.l.b16 %v599
    %v904 = vunpack.c.h.b16 %v599
    %v905 = vunpack.c.l.b16 %v600
    %v906 = vunpack.c.h.b16 %v600
    %v907 = vunpack.c.l.b16 %v601
    %v908 = vunpack.c.h.b16 %v601
    %v909 = vunpack.c.l.b16 %v602
    %v910 = vunpack.c.h.b16 %v602
    %v911 = vunpack.c.l.b16 %v603
    %v912 = vunpack.c.h.b16 %v603
    %v913 = vunpack.c.l.b16 %v604
    %v914 = vunpack.c.h.b16 %v604
    %v915 = vunpack.c.l.b16 %v605
    %v916 = vunpack.c.h.b16 %v605
    %v917 = vunpack.c.l.b16 %v606
    %v918 = vunpack.c.h.b16 %v606
    %v919 = vunpack.c.l.b16 %v607
    %v920 = vunpack.c.h.b16 %v607
    %v921 = vunpack.c.l.b16 %v608
    %v922 = vunpack.c.h.b16 %v608
    %v923 = vunpack.c.l.b16 %v609
    %v924 = vunpack.c.h.b16 %v609
    %v925 = vunpack.c.l.b16 %v610
    %v926 = vunpack.c.h.b16 %v610
    %v927 = vunpack.c.l.b16 %v611
    %v928 = vunpack.c.h.b16 %v611
    %v929 = vunpack.c.l.b16 %v612
    %v930 = vunpack.c.h.b16 %v612
    %v931 = vunpack.c.l.b16 %v613
    %v932 = vunpack.c.h.b16 %v613
    %v933 = vunpack.c.l.b16 %v614
    %v934 = vunpack.c.h.b16 %v614
    %v935 = vunpack.c.l.b16 %v615
    %v936 = vunpack.c.h.b16 %v615
    %v937 = vunpack.c.l.b16 %v616
    %v938 = vunpack.c.h.b16 %v616
    %v939 = vunpack.c.l.b16 %v617
    %v940 = vunpack.c.h.b16 %v617
    %v941 = vunpack.c.l.b16 %v618
    %v942 = vunpack.c.h.b16 %v618
    %v943 = vunpack.c.l.b16 %v619
    %v944 = vunpack.c.h.b16 %v619
    %v945 = vunpack.c.l.b16 %v620
    %v946 = vunpack.c.h.b16 %v620
    %v947 = vunpack.c.l.b16 %v621
    %v948 = vunpack.c.h.b16 %v621
    %v949 = vunpack.c.l.b16 %v622
    %v950 = vunpack.c.h.b16 %v622
    %v951 = vunpack.c.l.b16 %v623
    %v952 = vunpack.c.h.b16 %v623
    %v953 = vunpack.c.l.b16 %v624
    %v954 = vunpack.c.h.b16 %v624
    %v955 = vunpack.c.l.b16 %v625
    %v956 = vunpack.c.h.b16 %v625
    %v957 = vunpack.c.l.b16 %v626
    %v958 = vunpack.c.h.b16 %v626
    %v959 = vunpack.c.l.b16 %v627
    %v960 = vunpack.c.h.b16 %v627
    %v961 = vunpack.c.l.b16 %v628
    %v962 = vunpack.c.h.b16 %v628
    %v963 = vunpack.c.l.b16 %v629
    %v964 = vunpack.c.h.b16 %v629
    %v965 = vunpack.c.l.b16 %v630
    %v966 = vunpack.c.h.b16 %v630
    %v967 = vunpack.c.l.b16 %v631
    %v968 = vunpack.c.h.b16 %v631
    %v969 = vunpack.c.l.b16 %v632
    %v970 = vunpack.c.h.b16 %v632
    %v971 = vunpack.c.l.b16 %v633
    %v972 = vunpack.c.h.b16 %v633
    %v973 = vunpack.c.l.b16 %v634
    %v974 = vunpack.c.h.b16 %v634
    %v975 = vunpack.c.l.b16 %v635
    %v976 = vunpack.c.h.b16 %v635
    %v977 = vunpack.c.l.b16 %v636
    %v978 = vunpack.c.h.b16 %v636
    %v979 = vunpack.c.l.b16 %v637
    %v980 = vunpack.c.h.b16 %v637
    %v981 = vunpack.c.l.b16 %v638
    %v982 = vunpack.c.h.b16 %v638
    %v983 = vunpack.c.l.b16 %v639
    %v984 = vunpack.c.h.b16 %v639
    %v985 = vunpack.c.l.b16 %v640
    %v986 = vunpack.c.h.b16 %v640
    %v987 = vunpack.c.l.b16 %v641
    %v988 = vunpack.c.h.b16 %v641
    %v989 = vunpack.c.l.b16 %v642
    %v990 = vunpack.c.h.b16 %v642
    %v991 = vunpack.c.l.b16 %v643
    %v992 = vunpack.c.h.b16 %v643
    %v993 = vunpack.c.l.b16 %v644
    %v994 = vunpack.c.h.b16 %v644
    %v995 = vunpack.c.l.b16 %v645
    %v996 = vunpack.c.h.b16 %v645
    %v997 = vunpack.c.l.b16 %v646
    %v998 = vunpack.c.h.b16 %v646
    %v999 = vunpack.c.l.b16 %v647
    %v1000 = vunpack.c.h.b16 %v647
    %v1001 = vunpack.c.l.b16 %v648
    %v1002 = vunpack.c.h.b16 %v648
    %v1003 = vunpack.c.l.b16 %v649
    %v1004 = vunpack.c.h.b16 %v649
    %v1005 = vunpack.c.l.b16 %v650
    %v1006 = vunpack.c.h.b16 %v650
    %v1007 = vunpack.c.l.b16 %v651
    %v1008 = vunpack.c.h.b16 %v651
    %v1009 = vunpack.c.l.b16 %v652
    %v1010 = vunpack.c.h.b16 %v652
    %v1011 = vunpack.c.l.b16 %v653
    %v1012 = vunpack.c.h.b16 %v653
    %v1013 = vunpack.c.l.b16 %v654
    %v1014 = vunpack.c.h.b16 %v654
    %v1015 = vunpack.c.l.b16 %v655
    %v1016 = vunpack.c.h.b16 %v655
    %v1017 = vunpack.c.l.b16 %v656
    %v1018 = vunpack.c.h.b16 %v656
    %v1019 = vunpack.c.l.b16 %v657
    %v1020 = vunpack.c.h.b16 %v657
    %v1021 = vunpack.c.l.b16 %v658
    %v1022 = vunpack.c.h.b16 %v658
    %v1023 = vunpack.c.l.b16 %v659
    %v1024 = vunpack.c.h.b16 %v659
    %v1025 = vunpack.c.l.b16 %v660
    %v1026 = vunpack.c.h.b16 %v660
    %v1027 = vunpack.c.l.b16 %v661
    %v1028 = vunpack.c.h.b16 %v661
    %v1029 = vunpack.c.l.b16 %v662
    %v1030 = vunpack.c.h.b16 %v662
    %v1031 = vunpack.c.l.b16 %v663
    %v1032 = vunpack.c.h.b16 %v663
    %v1033 = vunpack.c.l.b16 %v664
    %v1034 = vunpack.c.h.b16 %v664
    %v1035 = vunpack.c.l.b16 %v665
    %v1036 = vunpack.c.h.b16 %v665
    %v1037 = vunpack.c.l.b16 %v666
    %v1038 = vunpack.c.h.b16 %v666
    %v1039 = vunpack.c.l.b16 %v667
    %v1040 = vunpack.c.h.b16 %v667
    %v1041 = vunpack.c.l.b16 %v668
    %v1042 = vunpack.c.h.b16 %v668
    %v1043 = vunpack.c.l.b16 %v669
    %v1044 = vunpack.c.h.b16 %v669
    %v1045 = vunpack.c.l.b16 %v670
    %v1046 = vunpack.c.h.b16 %v670
    %v1047 = vunpack.c.l.b16 %v671
    %v1048 = vunpack.c.h.b16 %v671
    %v1049 = vunpack.c.l.b16 %v672
    %v1050 = vunpack.c.h.b16 %v672
    %v1051 = vunpack.c.l.b16 %v673
    %v1052 = vunpack.c.h.b16 %v673
    %v1053 = vunpack.c.l.b16 %v674
    %v1054 = vunpack.c.h.b16 %v674
    %v1055 = vunpack.c.l.b16 %v675
    %v1056 = vunpack.c.h.b16 %v675
    %v1057 = vunpack.c.l.b16 %v676
    %v1058 = vunpack.c.h.b16 %v676
    %v1059 = vunpack.c.l.b16 %v677
    %v1060 = vunpack.c.h.b16 %v677
    %v1061 = vunpack.c.l.b16 %v678
    %v1062 = vunpack.c.h.b16 %v678
    %v1063 = vunpack.c.l.b16 %v679
    %v1064 = vunpack.c.h.b16 %v679
    %v1065 = vunpack.c.l.b16 %v680
    %v1066 = vunpack.c.h.b16 %v680
    %v1067 = vunpack.c.l.b16 %v681
    %v1068 = vunpack.c.h.b16 %v681
    %v1069 = vunpack.c.l.b16 %v682
    %v1070 = vunpack.c.h.b16 %v682
    %v1071 = vunpack.c.l.b16 %v683
    %v1072 = vunpack.c.h.b16 %v683
    %v1073 = vunpack.c.l.b16 %v684
    %v1074 = vunpack.c.h.b16 %v684
    %v1075 = vunpack.c.l.b16 %v685
    %v1076 = vunpack.c.h.b16 %v685
    %v1077 = vunpack.c.l.b16 %v686
    %v1078 = vunpack.c.h.b16 %v686
    %v1079 = vunpack.c.l.b16 %v687
    %v1080 = vunpack.c.h.b16 %v687
    %v1081 = vunpack.c.l.b16 %v688
    %v1082 = vunpack.c.h.b16 %v688
    %v1083 = vunpack.c.l.b16 %v689
    %v1084 = vunpack.c.h.b16 %v689
    %v1085 = vunpack.c.l.b16 %v690
    %v1086 = vunpack.c.h.b16 %v690
    %v1087 = vunpack.c.l.b16 %v691
    %v1088 = vunpack.c.h.b16 %v691
    %v1089 = vunpack.c.l.b16 %v692
    %v1090 = vunpack.c.h.b16 %v692
    %v1091 = vunpack.c.l.b16 %v693
    %v1092 = vunpack.c.h.b16 %v693
    %v1093 = vunpack.c.l.b16 %v694
    %v1094 = vunpack.c.h.b16 %v694
    %v1095 = vunpack.c.l.b16 %v695
    %v1096 = vunpack.c.h.b16 %v695
    %v1097 = vunpack.c.l.b16 %v696
    %v1098 = vunpack.c.h.b16 %v696
    %v1099 = vunpack.c.l.b16 %v697
    %v1100 = vunpack.c.h.b16 %v697
    %v1101 = vunpack.c.l.b16 %v698
    %v1102 = vunpack.c.h.b16 %v698
    %v1103 = vunpack.c.l.b16 %v699
    %v1104 = vunpack.c.h.b16 %v699
    %v1105 = vunpack.c.l.b16 %v700
    %v1106 = vunpack.c.h.b16 %v700
    %v1107 = vpack.c.b16 %v855, %v851
    %v1108 = vpack.c.b16 %v856, %v852
    %v1109 = vpack.c.b16 %v857, %v853
    %v1110 = vpack.c.b16 %v858, %v854
    %v1111 = vpack.c.b16 %v863, %v859
    %v1112 = vpack.c.b16 %v864, %v860
    %v1113 = vpack.c.b16 %v865, %v861
    %v1114 = vpack.c.b16 %v866, %v862
    %v1115 = vpack.c.b16 %v871, %v867
    %v1116 = vpack.c.b16 %v872, %v868
    %v1117 = vpack.c.b16 %v873, %v869
    %v1118 = vpack.c.b16 %v874, %v870
    %v1119 = vpack.c.b16 %v879, %v875
    %v1120 = vpack.c.b16 %v880, %v876
    %v1121 = vpack.c.b16 %v881, %v877
    %v1122 = vpack.c.b16 %v882, %v878
    %v1123 = vpack.c.b16 %v887, %v883
    %v1124 = vpack.c.b16 %v888, %v884
    %v1125 = vpack.c.b16 %v889, %v885
    %v1126 = vpack.c.b16 %v890, %v886
    %v1127 = vpack.c.b16 %v895, %v891
    %v1128 = vpack.c.b16 %v896, %v892
    %v1129 = vpack.c.b16 %v897, %v893
    %v1130 = vpack.c.b16 %v898, %v894
    %v1131 = vpack.c.b16 %v903, %v899
    %v1132 = vpack.c.b16 %v904, %v900
    %v1133 = vpack.c.b16 %v905, %v901
    %v1134 = vpack.c.b16 %v906, %v902
    %v1135 = vpack.c.b16 %v911, %v907
    %v1136 = vpack.c.b16 %v912, %v908
    %v1137 = vpack.c.b16 %v913, %v909
    %v1138 = vpack.c.b16 %v914, %v910
    %v1139 = vpack.c.b16 %v919, %v915
    %v1140 = vpack.c.b16 %v920, %v916
    %v1141 = vpack.c.b16 %v921, %v917
    %v1142 = vpack.c.b16 %v922, %v918
    %v1143 = vpack.c.b16 %v927, %v923
    %v1144 = vpack.c.b16 %v928, %v924
    %v1145 = vpack.c.b16 %v929, %v925
    %v1146 = vpack.c.b16 %v930, %v926
    %v1147 = vpack.c.b16 %v935, %v931
    %v1148 = vpack.c.b16 %v936, %v932
    %v1149 = vpack.c.b16 %v937, %v933
    %v1150 = vpack.c.b16 %v938, %v934
    %v1151 = vpack.c.b16 %v943, %v939
    %v1152 = vpack.c.b16 %v944, %v940
    %v1153 = vpack.c.b16 %v945, %v941
    %v1154 = vpack.c.b16 %v946, %v942
    %v1155 = vpack.c.b16 %v951, %v947
    %v1156 = vpack.c.b16 %v952, %v948
    %v1157 = vpack.c.b16 %v953, %v949
    %v1158 = vpack.c.b16 %v954, %v950
    %v1159 = vpack.c.b16 %v959, %v955
    %v1160 = vpack.c.b16 %v960, %v956
    %v1161 = vpack.c.b16 %v961, %v957
    %v1162 = vpack.c.b16 %v962, %v958
    %v1163 = vpack.c.b16 %v967, %v963
    %v1164 = vpack.c.b16 %v968, %v964
    %v1165 = vpack.c.b16 %v969, %v965
    %v1166 = vpack.c.b16 %v970, %v966
    %v1167 = vpack.c.b16 %v975, %v971
    %v1168 = vpack.c.b16 %v976, %v972
    %v1169 = vpack.c.b16 %v977, %v973
    %v1170 = vpack.c.b16 %v978, %v974
    %v1171 = vpack.c.b16 %v983, %v979
    %v1172 = vpack.c.b16 %v984, %v980
    %v1173 = vpack.c.b16 %v985, %v981
    %v1174 = vpack.c.b16 %v986, %v982
    %v1175 = vpack.c.b16 %v991, %v987
    %v1176 = vpack.c.b16 %v992, %v988
    %v1177 = vpack.c.b16 %v993, %v989
    %v1178 = vpack.c.b16 %v994, %v990
    %v1179 = vpack.c.b16 %v999, %v995
    %v1180 = vpack.c.b16 %v1000, %v996
    %v1181 = vpack.c.b16 %v1001, %v997
    %v1182 = vpack.c.b16 %v1002, %v998
    %v1183 = vpack.c.b16 %v1007, %v1003
    %v1184 = vpack.c.b16 %v1008, %v1004
    %v1185 = vpack.c.b16 %v1009, %v1005
    %v1186 = vpack.c.b16 %v1010, %v1006
    %v1187 = vpack.c.b16 %v1015, %v1011
    %v1188 = vpack.c.b16 %v1016, %v1012
    %v1189 = vpack.c.b16 %v1017, %v1013
    %v1190 = vpack.c.b16 %v1018, %v1014
    %v1191 = vpack.c.b16 %v1023, %v1019
    %v1192 = vpack.c.b16 %v1024, %v1020
    %v1193 = vpack.c.b16 %v1025, %v1021
    %v1194 = vpack.c.b16 %v1026, %v1022
    %v1195 = vpack.c.b16 %v1031, %v1027
    %v1196 = vpack.c.b16 %v1032, %v1028
    %v1197 = vpack.c.b16 %v1033, %v1029
    %v1198 = vpack.c.b16 %v1034, %v1030
    %v1199 = vpack.c.b16 %v1039, %v1035
    %v1200 = vpack.c.b16 %v1040, %v1036
    %v1201 = vpack.c.b16 %v1041, %v1037
    %v1202 = vpack.c.b16 %v1042, %v1038
    %v1203 = vpack.c.b16 %v1047, %v1043
    %v1204 = vpack.c.b16 %v1048, %v1044
    %v1205 = vpack.c.b16 %v1049, %v1045
    %v1206 = vpack.c.b16 %v1050, %v1046
    %v1207 = vpack.c.b16 %v1055, %v1051
    %v1208 = vpack.c.b16 %v1056, %v1052
    %v1209 = vpack.c.b16 %v1057, %v1053
    %v1210 = vpack.c.b16 %v1058, %v1054
    %v1211 = vpack.c.b16 %v1063, %v1059
    %v1212 = vpack.c.b16 %v1064, %v1060
    %v1213 = vpack.c.b16 %v1065, %v1061
    %v1214 = vpack.c.b16 %v1066, %v1062
    %v1215 = vpack.c.b16 %v1071, %v1067
    %v1216 = vpack.c.b16 %v1072, %v1068
    %v1217 = vpack.c.b16 %v1073, %v1069
    %v1218 = vpack.c.b16 %v1074, %v1070
    %v1219 = vpack.c.b16 %v1079, %v1075
    %v1220 = vpack.c.b16 %v1080, %v1076
    %v1221 = vpack.c.b16 %v1081, %v1077
    %v1222 = vpack.c.b16 %v1082, %v1078
    %v1223 = vpack.c.b16 %v1087, %v1083
    %v1224 = vpack.c.b16 %v1088, %v1084
    %v1225 = vpack.c.b16 %v1089, %v1085
    %v1226 = vpack.c.b16 %v1090, %v1086
    %v1227 = vpack.c.b16 %v1095, %v1091
    %v1228 = vpack.c.b16 %v1096, %v1092
    %v1229 = vpack.c.b16 %v1097, %v1093
    %v1230 = vpack.c.b16 %v1098, %v1094
    %v1231 = vpack.c.b16 %v1103, %v1099
    %v1232 = vpack.c.b16 %v1104, %v1100
    %v1233 = vpack.c.b16 %v1105, %v1101
    %v1234 = vpack.c.b16 %v1106, %v1102
    %1363 = vmatprep.subr.bf16.mxu0 %v1108
    %1364 = vmatpush1.bf16.msra.mxu0 %v1107
    %1365 = vmatprep.subr.bf16.mxu0 %v1112
    %1366 = vmatpush1.bf16.msra.mxu0 %v1111
    %1367 = vmatprep.subr.bf16.mxu0 %v1116
    %1368 = vmatpush1.bf16.msra.mxu0 %v1115
    %1369 = vmatprep.subr.bf16.mxu0 %v1120
    %1370 = vmatpush1.bf16.msra.mxu0 %v1119
    %1371 = vmatprep.subr.bf16.mxu0 %v1124
    %1372 = vmatpush1.bf16.msra.mxu0 %v1123
    %1373 = vmatprep.subr.bf16.mxu0 %v1128
    %1374 = vmatpush1.bf16.msra.mxu0 %v1127
    %1375 = vmatprep.subr.bf16.mxu0 %v1132
    %1376 = vmatpush1.bf16.msra.mxu0 %v1131
    %1377 = vmatprep.subr.bf16.mxu0 %v1136
    %1378 = vmatpush1.bf16.msra.mxu0 %v1135
    %1379 = vmatprep.subr.bf16.mxu0 %v1140
    %1380 = vmatpush1.bf16.msra.mxu0 %v1139
    %1381 = vmatprep.subr.bf16.mxu0 %v1144
    %1382 = vmatpush1.bf16.msra.mxu0 %v1143
    %1383 = vmatprep.subr.bf16.mxu0 %v1148
    %1384 = vmatpush1.bf16.msra.mxu0 %v1147
    %1385 = vmatprep.subr.bf16.mxu0 %v1152
    %1386 = vmatpush1.bf16.msra.mxu0 %v1151
    %1387 = vmatprep.subr.bf16.mxu0 %v1156
    %1388 = vmatpush1.bf16.msra.mxu0 %v1155
    %1389 = vmatprep.subr.bf16.mxu0 %v1160
    %1390 = vmatpush1.bf16.msra.mxu0 %v1159
    %1391 = vmatprep.subr.bf16.mxu0 %v1164
    %1392 = vmatpush1.bf16.msra.mxu0 %v1163
    %1393 = vmatprep.subr.bf16.mxu0 %v1168
    %1394 = vmatpush1.bf16.msra.mxu0 %v1167
    %1395 = vmatprep.mubr.bf16.mxu0 %v570
    %1396 = vmatmul.mubr.bf16.gmra.mrb[0].mxu0 %v569
    %v1397 = vpop.f32.mrb[0].mxu0
    %v1398 = vadd.f32 %v706, %v1397
    %v1399 = vpop.f32.mrb[0].mxu0
    %v1400 = vadd.f32 %v710, %v1399
    %v1401 = vpop.f32.mrb[0].mxu0
    %v1402 = vpop.f32.mrb[0].mxu0
    %1403 = vdwg.mxu0
    %1404 = vmatprep.subr.bf16.mxu0 %v1172
    %1405 = vmatpush1.bf16.msra.mxu0 %v1171
    %1406 = vmatprep.subr.bf16.mxu0 %v1176
    %1407 = vmatpush1.bf16.msra.mxu0 %v1175
    %1408 = vmatprep.subr.bf16.mxu0 %v1180
    %1409 = vmatpush1.bf16.msra.mxu0 %v1179
    %1410 = vmatprep.subr.bf16.mxu0 %v1184
    %1411 = vmatpush1.bf16.msra.mxu0 %v1183
    %1412 = vmatprep.subr.bf16.mxu0 %v1188
    %1413 = vmatpush1.bf16.msra.mxu0 %v1187
    %1414 = vmatprep.subr.bf16.mxu0 %v1192
    %1415 = vmatpush1.bf16.msra.mxu0 %v1191
    %1416 = vmatprep.subr.bf16.mxu0 %v1196
    %1417 = vmatpush1.bf16.msra.mxu0 %v1195
    %1418 = vmatprep.subr.bf16.mxu0 %v1200
    %1419 = vmatpush1.bf16.msra.mxu0 %v1199
    %1420 = vmatprep.subr.bf16.mxu0 %v1204
    %1421 = vmatpush1.bf16.msra.mxu0 %v1203
    %1422 = vmatprep.subr.bf16.mxu0 %v1208
    %1423 = vmatpush1.bf16.msra.mxu0 %v1207
    %1424 = vmatprep.subr.bf16.mxu0 %v1212
    %1425 = vmatpush1.bf16.msra.mxu0 %v1211
    %1426 = vmatprep.subr.bf16.mxu0 %v1216
    %1427 = vmatpush1.bf16.msra.mxu0 %v1215
    %1428 = vmatprep.subr.bf16.mxu0 %v1220
    %1429 = vmatpush1.bf16.msra.mxu0 %v1219
    %1430 = vmatprep.subr.bf16.mxu0 %v1224
    %1431 = vmatpush1.bf16.msra.mxu0 %v1223
    %1432 = vmatprep.subr.bf16.mxu0 %v1228
    %1433 = vmatpush1.bf16.msra.mxu0 %v1227
    %1434 = vmatprep.subr.bf16.mxu0 %v1232
    %1435 = vmatpush1.bf16.msra.mxu0 %v1231
    %1436 = vmatprep.mubr.bf16.mxu0 %v572
    %1437 = vmatmul.mubr.bf16.gmra.mrb[0].mxu0 %v571
    %v1438 = vpop.f32.mrb[0].mxu0
    %v1439 = vadd.f32 %v1398, %v1438
    %v1440 = vpop.f32.mrb[0].mxu0
    %v1441 = vadd.f32 %v1400, %v1440
    %v1442 = vpop.f32.mrb[0].mxu0
    %v1443 = vpop.f32.mrb[0].mxu0
    %1444 = vdwg.mxu0
    %1445 = vmatprep.subr.bf16.mxu0 %v1110
    %1446 = vmatpush1.bf16.msra.mxu0 %v1109
    %1447 = vmatprep.subr.bf16.mxu0 %v1114
    %1448 = vmatpush1.bf16.msra.mxu0 %v1113
    %1449 = vmatprep.subr.bf16.mxu0 %v1118
    %1450 = vmatpush1.bf16.msra.mxu0 %v1117
    %1451 = vmatprep.subr.bf16.mxu0 %v1122
    %1452 = vmatpush1.bf16.msra.mxu0 %v1121
    %1453 = vmatprep.subr.bf16.mxu0 %v1126
    %1454 = vmatpush1.bf16.msra.mxu0 %v1125
    %1455 = vmatprep.subr.bf16.mxu0 %v1130
    %1456 = vmatpush1.bf16.msra.mxu0 %v1129
    %1457 = vmatprep.subr.bf16.mxu0 %v1134
    %1458 = vmatpush1.bf16.msra.mxu0 %v1133
    %1459 = vmatprep.subr.bf16.mxu0 %v1138
    %1460 = vmatpush1.bf16.msra.mxu0 %v1137
    %1461 = vmatprep.subr.bf16.mxu0 %v1142
    %1462 = vmatpush1.bf16.msra.mxu0 %v1141
    %1463 = vmatprep.subr.bf16.mxu0 %v1146
    %1464 = vmatpush1.bf16.msra.mxu0 %v1145
    %1465 = vmatprep.subr.bf16.mxu0 %v1150
    %1466 = vmatpush1.bf16.msra.mxu0 %v1149
    %1467 = vmatprep.subr.bf16.mxu0 %v1154
    %1468 = vmatpush1.bf16.msra.mxu0 %v1153
    %1469 = vmatprep.subr.bf16.mxu0 %v1158
    %1470 = vmatpush1.bf16.msra.mxu0 %v1157
    %1471 = vmatprep.subr.bf16.mxu0 %v1162
    %1472 = vmatpush1.bf16.msra.mxu0 %v1161
    %1473 = vmatprep.subr.bf16.mxu0 %v1166
    %1474 = vmatpush1.bf16.msra.mxu0 %v1165
    %1475 = vmatprep.subr.bf16.mxu0 %v1170
    %1476 = vmatpush1.bf16.msra.mxu0 %v1169
    %1477 = vmatprep.mubr.bf16.mxu0 %v570
    %1478 = vmatmul.mubr.bf16.gmra.mrb[0].mxu0 %v569
    %v1479 = vpop.f32.mrb[0].mxu0
    %v1480 = vadd.f32 %v714, %v1479
    %v1481 = vpop.f32.mrb[0].mxu0
    %v1482 = vadd.f32 %v718, %v1481
    %v1483 = vpop.f32.mrb[0].mxu0
    %v1484 = vpop.f32.mrb[0].mxu0
    %1485 = vdwg.mxu0
    %1486 = vmatprep.subr.bf16.mxu0 %v1174
    %1487 = vmatpush1.bf16.msra.mxu0 %v1173
    %1488 = vmatprep.subr.bf16.mxu0 %v1178
    %1489 = vmatpush1.bf16.msra.mxu0 %v1177
    %1490 = vmatprep.subr.bf16.mxu0 %v1182
    %1491 = vmatpush1.bf16.msra.mxu0 %v1181
    %1492 = vmatprep.subr.bf16.mxu0 %v1186
    %1493 = vmatpush1.bf16.msra.mxu0 %v1185
    %1494 = vmatprep.subr.bf16.mxu0 %v1190
    %1495 = vmatpush1.bf16.msra.mxu0 %v1189
    %1496 = vmatprep.subr.bf16.mxu0 %v1194
    %1497 = vmatpush1.bf16.msra.mxu0 %v1193
    %1498 = vmatprep.subr.bf16.mxu0 %v1198
    %1499 = vmatpush1.bf16.msra.mxu0 %v1197
    %1500 = vmatprep.subr.bf16.mxu0 %v1202
    %1501 = vmatpush1.bf16.msra.mxu0 %v1201
    %1502 = vmatprep.subr.bf16.mxu0 %v1206
    %1503 = vmatpush1.bf16.msra.mxu0 %v1205
    %1504 = vmatprep.subr.bf16.mxu0 %v1210
    %1505 = vmatpush1.bf16.msra.mxu0 %v1209
    %1506 = vmatprep.subr.bf16.mxu0 %v1214
    %1507 = vmatpush1.bf16.msra.mxu0 %v1213
    %1508 = vmatprep.subr.bf16.mxu0 %v1218
    %1509 = vmatpush1.bf16.msra.mxu0 %v1217
    %1510 = vmatprep.subr.bf16.mxu0 %v1222
    %1511 = vmatpush1.bf16.msra.mxu0 %v1221
    %1512 = vmatprep.subr.bf16.mxu0 %v1226
    %1513 = vmatpush1.bf16.msra.mxu0 %v1225
    %1514 = vmatprep.subr.bf16.mxu0 %v1230
    %1515 = vmatpush1.bf16.msra.mxu0 %v1229
    %1516 = vmatprep.subr.bf16.mxu0 %v1234
    %1517 = vmatpush1.bf16.msra.mxu0 %v1233
    %1518 = vmatprep.mubr.bf16.mxu0 %v572
    %1519 = vmatmul.mubr.bf16.gmra.mrb[0].mxu0 %v571
    %v1520 = vpop.f32.mrb[0].mxu0
    %v1521 = vadd.f32 %v1480, %v1520
    %v1522 = vpop.f32.mrb[0].mxu0
    %v1523 = vadd.f32 %v1482, %v1522
    %v1524 = vpop.f32.mrb[0].mxu0
    %v1525 = vpop.f32.mrb[0].mxu0
    %1526 = vdwg.mxu0
    %v1527 = vmax.f32 %v1439, 0.0
    %v1528 = vmax.f32 %v1441, 0.0
    %v1529 = vmax.f32 %v1521, 0.0
    %v1530 = vmax.f32 %v1523, 0.0
    %v1531 = vpack.c.bf16 %v1527, %v1527
    %v1532 = vpack.c.bf16 %v1528, %v1528
    %v1533 = vpack.c.bf16 %v1529, %v1529
    %v1534 = vpack.c.bf16 %v1530, %v1530
    %v1535 = vld [vmem:[#allocation7] sm:$0xf]
    %v1536 = vld [vmem:[#allocation7 + $0x4] sm:$0xf]
    %v1537 = vld [vmem:[#allocation7 + $0x8] sm:$0xf]
    %v1538 = vld [vmem:[#allocation7 + $0xc] sm:$0xf]
    %v1539 = vld [vmem:[#allocation7 + $0x10] sm:$0xf]
    %v1540 = vld [vmem:[#allocation7 + $0x14] sm:$0xf]
    %v1541 = vld [vmem:[#allocation7 + $0x18] sm:$0xf]
    %v1542 = vld [vmem:[#allocation7 + $0x1c] sm:$0xf]
    %v1543 = vld [vmem:[#allocation7 + $0x20] sm:$0xf]
    %v1544 = vld [vmem:[#allocation7 + $0x24] sm:$0xf]
    %v1545 = vld [vmem:[#allocation7 + $0x28] sm:$0xf]
    %v1546 = vld [vmem:[#allocation7 + $0x2c] sm:$0xf]
    %v1547 = vld [vmem:[#allocation7 + $0x30] sm:$0xf]
    %v1548 = vld [vmem:[#allocation7 + $0x34] sm:$0xf]
    %v1549 = vld [vmem:[#allocation7 + $0x38] sm:$0xf]
    %v1550 = vld [vmem:[#allocation7 + $0x3c] sm:$0xf]
    %v1551 = vld [vmem:[#allocation7 + $0x40] sm:$0xf]
    %v1552 = vld [vmem:[#allocation7 + $0x44] sm:$0xf]
    %v1553 = vld [vmem:[#allocation7 + $0x48] sm:$0xf]
    %v1554 = vld [vmem:[#allocation7 + $0x4c] sm:$0xf]
    %v1555 = vld [vmem:[#allocation7 + $0x50] sm:$0xf]
    %v1556 = vld [vmem:[#allocation7 + $0x54] sm:$0xf]
    %v1557 = vld [vmem:[#allocation7 + $0x58] sm:$0xf]
    %v1558 = vld [vmem:[#allocation7 + $0x5c] sm:$0xf]
    %v1559 = vld [vmem:[#allocation7 + $0x60] sm:$0xf]
    %v1560 = vld [vmem:[#allocation7 + $0x64] sm:$0xf]
    %v1561 = vld [vmem:[#allocation7 + $0x68] sm:$0xf]
    %v1562 = vld [vmem:[#allocation7 + $0x6c] sm:$0xf]
    %v1563 = vld [vmem:[#allocation7 + $0x70] sm:$0xf]
    %v1564 = vld [vmem:[#allocation7 + $0x74] sm:$0xf]
    %v1565 = vld [vmem:[#allocation7 + $0x78] sm:$0xf]
    %v1566 = vld [vmem:[#allocation7 + $0x7c] sm:$0xf]
    %v1567 = vld [vmem:[#allocation7 + $0x80] sm:$0xf]
    %v1568 = vld [vmem:[#allocation7 + $0x84] sm:$0xf]
    %v1569 = vld [vmem:[#allocation7 + $0x88] sm:$0xf]
    %v1570 = vld [vmem:[#allocation7 + $0x8c] sm:$0xf]
    %v1571 = vld [vmem:[#allocation7 + $0x90] sm:$0xf]
    %v1572 = vld [vmem:[#allocation7 + $0x94] sm:$0xf]
    %v1573 = vld [vmem:[#allocation7 + $0x98] sm:$0xf]
    %v1574 = vld [vmem:[#allocation7 + $0x9c] sm:$0xf]
    %v1575 = vld [vmem:[#allocation7 + $0xa0] sm:$0xf]
    %v1576 = vld [vmem:[#allocation7 + $0xa4] sm:$0xf]
    %v1577 = vld [vmem:[#allocation7 + $0xa8] sm:$0xf]
    %v1578 = vld [vmem:[#allocation7 + $0xac] sm:$0xf]
    %v1579 = vld [vmem:[#allocation7 + $0xb0] sm:$0xf]
    %v1580 = vld [vmem:[#allocation7 + $0xb4] sm:$0xf]
    %v1581 = vld [vmem:[#allocation7 + $0xb8] sm:$0xf]
    %v1582 = vld [vmem:[#allocation7 + $0xbc] sm:$0xf]
    %v1583 = vld [vmem:[#allocation7 + $0xc0] sm:$0xf]
    %v1584 = vld [vmem:[#allocation7 + $0xc4] sm:$0xf]
    %v1585 = vld [vmem:[#allocation7 + $0xc8] sm:$0xf]
    %v1586 = vld [vmem:[#allocation7 + $0xcc] sm:$0xf]
    %v1587 = vld [vmem:[#allocation7 + $0xd0] sm:$0xf]
    %v1588 = vld [vmem:[#allocation7 + $0xd4] sm:$0xf]
    %v1589 = vld [vmem:[#allocation7 + $0xd8] sm:$0xf]
    %v1590 = vld [vmem:[#allocation7 + $0xdc] sm:$0xf]
    %v1591 = vld [vmem:[#allocation7 + $0xe0] sm:$0xf]
    %v1592 = vld [vmem:[#allocation7 + $0xe4] sm:$0xf]
    %v1593 = vld [vmem:[#allocation7 + $0xe8] sm:$0xf]
    %v1594 = vld [vmem:[#allocation7 + $0xec] sm:$0xf]
    %v1595 = vld [vmem:[#allocation7 + $0xf0] sm:$0xf]
    %v1596 = vld [vmem:[#allocation7 + $0xf4] sm:$0xf]
    %v1597 = vld [vmem:[#allocation7 + $0xf8] sm:$0xf]
    %v1598 = vld [vmem:[#allocation7 + $0xfc] sm:$0xf]
    %v1599 = vld [vmem:[%s6] sm:$0x1]
    %v1601 = vlaneseq
    %v1602 = vshrl.u32 %v1601, 7
    %v1603 = vsub.s32 0, %v1602
    %v1604 = vrot.slane %v1599, %v1603
    %v1670 = vunpack.c.l.b16 %v1535
    %v1671 = vunpack.c.l.b16 %v1536
    %v1672 = vunpack.c.l.b16 %v1537
    %v1673 = vunpack.c.l.b16 %v1538
    %v1674 = vunpack.c.l.b16 %v1539
    %v1675 = vunpack.c.l.b16 %v1540
    %v1676 = vunpack.c.l.b16 %v1541
    %v1677 = vunpack.c.l.b16 %v1542
    %v1678 = vunpack.c.l.b16 %v1543
    %v1679 = vunpack.c.l.b16 %v1544
    %v1680 = vunpack.c.l.b16 %v1545
    %v1681 = vunpack.c.l.b16 %v1546
    %v1682 = vunpack.c.l.b16 %v1547
    %v1683 = vunpack.c.l.b16 %v1548
    %v1684 = vunpack.c.l.b16 %v1549
    %v1685 = vunpack.c.l.b16 %v1550
    %v1686 = vunpack.c.l.b16 %v1551
    %v1687 = vunpack.c.l.b16 %v1552
    %v1688 = vunpack.c.l.b16 %v1553
    %v1689 = vunpack.c.l.b16 %v1554
    %v1690 = vunpack.c.l.b16 %v1555
    %v1691 = vunpack.c.l.b16 %v1556
    %v1692 = vunpack.c.l.b16 %v1557
    %v1693 = vunpack.c.l.b16 %v1558
    %v1694 = vunpack.c.l.b16 %v1559
    %v1695 = vunpack.c.l.b16 %v1560
    %v1696 = vunpack.c.l.b16 %v1561
    %v1697 = vunpack.c.l.b16 %v1562
    %v1698 = vunpack.c.l.b16 %v1563
    %v1699 = vunpack.c.l.b16 %v1564
    %v1700 = vunpack.c.l.b16 %v1565
    %v1701 = vunpack.c.l.b16 %v1566
    %v1702 = vunpack.c.l.b16 %v1567
    %v1703 = vunpack.c.l.b16 %v1568
    %v1704 = vunpack.c.l.b16 %v1569
    %v1705 = vunpack.c.l.b16 %v1570
    %v1706 = vunpack.c.l.b16 %v1571
    %v1707 = vunpack.c.l.b16 %v1572
    %v1708 = vunpack.c.l.b16 %v1573
    %v1709 = vunpack.c.l.b16 %v1574
    %v1710 = vunpack.c.l.b16 %v1575
    %v1711 = vunpack.c.l.b16 %v1576
    %v1712 = vunpack.c.l.b16 %v1577
    %v1713 = vunpack.c.l.b16 %v1578
    %v1714 = vunpack.c.l.b16 %v1579
    %v1715 = vunpack.c.l.b16 %v1580
    %v1716 = vunpack.c.l.b16 %v1581
    %v1717 = vunpack.c.l.b16 %v1582
    %v1718 = vunpack.c.l.b16 %v1583
    %v1719 = vunpack.c.l.b16 %v1584
    %v1720 = vunpack.c.l.b16 %v1585
    %v1721 = vunpack.c.l.b16 %v1586
    %v1722 = vunpack.c.l.b16 %v1587
    %v1723 = vunpack.c.l.b16 %v1588
    %v1724 = vunpack.c.l.b16 %v1589
    %v1725 = vunpack.c.l.b16 %v1590
    %v1726 = vunpack.c.l.b16 %v1591
    %v1727 = vunpack.c.l.b16 %v1592
    %v1728 = vunpack.c.l.b16 %v1593
    %v1729 = vunpack.c.l.b16 %v1594
    %v1730 = vunpack.c.l.b16 %v1595
    %v1731 = vunpack.c.l.b16 %v1596
    %v1732 = vunpack.c.l.b16 %v1597
    %v1733 = vunpack.c.l.b16 %v1598
    %v1734 = vpack.c.b16 %v1671, %v1670
    %v1735 = vpack.c.b16 %v1673, %v1672
    %v1736 = vpack.c.b16 %v1675, %v1674
    %v1737 = vpack.c.b16 %v1677, %v1676
    %v1738 = vpack.c.b16 %v1679, %v1678
    %v1739 = vpack.c.b16 %v1681, %v1680
    %v1740 = vpack.c.b16 %v1683, %v1682
    %v1741 = vpack.c.b16 %v1685, %v1684
    %v1742 = vpack.c.b16 %v1687, %v1686
    %v1743 = vpack.c.b16 %v1689, %v1688
    %v1744 = vpack.c.b16 %v1691, %v1690
    %v1745 = vpack.c.b16 %v1693, %v1692
    %v1746 = vpack.c.b16 %v1695, %v1694
    %v1747 = vpack.c.b16 %v1697, %v1696
    %v1748 = vpack.c.b16 %v1699, %v1698
    %v1749 = vpack.c.b16 %v1701, %v1700
    %v1750 = vpack.c.b16 %v1703, %v1702
    %v1751 = vpack.c.b16 %v1705, %v1704
    %v1752 = vpack.c.b16 %v1707, %v1706
    %v1753 = vpack.c.b16 %v1709, %v1708
    %v1754 = vpack.c.b16 %v1711, %v1710
    %v1755 = vpack.c.b16 %v1713, %v1712
    %v1756 = vpack.c.b16 %v1715, %v1714
    %v1757 = vpack.c.b16 %v1717, %v1716
    %v1758 = vpack.c.b16 %v1719, %v1718
    %v1759 = vpack.c.b16 %v1721, %v1720
    %v1760 = vpack.c.b16 %v1723, %v1722
    %v1761 = vpack.c.b16 %v1725, %v1724
    %v1762 = vpack.c.b16 %v1727, %v1726
    %v1763 = vpack.c.b16 %v1729, %v1728
    %v1764 = vpack.c.b16 %v1731, %v1730
    %v1765 = vpack.c.b16 %v1733, %v1732
    %1798 = vmatprep.subr.bf16.mxu0 0
    %1799 = vmatpush1.bf16.msra.mxu0 %v1734
    %1800 = vmatprep.subr.bf16.mxu0 0
    %1801 = vmatpush1.bf16.msra.mxu0 %v1735
    %1802 = vmatprep.subr.bf16.mxu0 0
    %1803 = vmatpush1.bf16.msra.mxu0 %v1736
    %1804 = vmatprep.subr.bf16.mxu0 0
    %1805 = vmatpush1.bf16.msra.mxu0 %v1737
    %1806 = vmatprep.subr.bf16.mxu0 0
    %1807 = vmatpush1.bf16.msra.mxu0 %v1738
    %1808 = vmatprep.subr.bf16.mxu0 0
    %1809 = vmatpush1.bf16.msra.mxu0 %v1739
    %1810 = vmatprep.subr.bf16.mxu0 0
    %1811 = vmatpush1.bf16.msra.mxu0 %v1740
    %1812 = vmatprep.subr.bf16.mxu0 0
    %1813 = vmatpush1.bf16.msra.mxu0 %v1741
    %1814 = vmatprep.subr.bf16.mxu0 0
    %1815 = vmatpush1.bf16.msra.mxu0 %v1742
    %1816 = vmatprep.subr.bf16.mxu0 0
    %1817 = vmatpush1.bf16.msra.mxu0 %v1743
    %1818 = vmatprep.subr.bf16.mxu0 0
    %1819 = vmatpush1.bf16.msra.mxu0 %v1744
    %1820 = vmatprep.subr.bf16.mxu0 0
    %1821 = vmatpush1.bf16.msra.mxu0 %v1745
    %1822 = vmatprep.subr.bf16.mxu0 0
    %1823 = vmatpush1.bf16.msra.mxu0 %v1746
    %1824 = vmatprep.subr.bf16.mxu0 0
    %1825 = vmatpush1.bf16.msra.mxu0 %v1747
    %1826 = vmatprep.subr.bf16.mxu0 0
    %1827 = vmatpush1.bf16.msra.mxu0 %v1748
    %1828 = vmatprep.subr.bf16.mxu0 0
    %1829 = vmatpush1.bf16.msra.mxu0 %v1749
    %1830 = vmatprep.mubr.bf16.mxu0 %v1532
    %1831 = vmatmul.mubr.bf16.gmra.mrb[0].mxu0 %v1531
    %v1832 = vpop.f32.mrb[0].mxu0
    %v1833 = vadd.f32 %v1604, %v1832
    %v1834 = vpop.f32.mrb[0].mxu0
    %v1835 = vpop.f32.mrb[0].mxu0
    %v1836 = vpop.f32.mrb[0].mxu0
    %1837 = vdwg.mxu0
    %1838 = vmatprep.subr.bf16.mxu0 0
    %1839 = vmatpush1.bf16.msra.mxu0 %v1750
    %1840 = vmatprep.subr.bf16.mxu0 0
    %1841 = vmatpush1.bf16.msra.mxu0 %v1751
    %1842 = vmatprep.subr.bf16.mxu0 0
    %1843 = vmatpush1.bf16.msra.mxu0 %v1752
    %1844 = vmatprep.subr.bf16.mxu0 0
    %1845 = vmatpush1.bf16.msra.mxu0 %v1753
    %1846 = vmatprep.subr.bf16.mxu0 0
    %1847 = vmatpush1.bf16.msra.mxu0 %v1754
    %1848 = vmatprep.subr.bf16.mxu0 0
    %1849 = vmatpush1.bf16.msra.mxu0 %v1755
    %1850 = vmatprep.subr.bf16.mxu0 0
    %1851 = vmatpush1.bf16.msra.mxu0 %v1756
    %1852 = vmatprep.subr.bf16.mxu0 0
    %1853 = vmatpush1.bf16.msra.mxu0 %v1757
    %1854 = vmatprep.subr.bf16.mxu0 0
    %1855 = vmatpush1.bf16.msra.mxu0 %v1758
    %1856 = vmatprep.subr.bf16.mxu0 0
    %1857 = vmatpush1.bf16.msra.mxu0 %v1759
    %1858 = vmatprep.subr.bf16.mxu0 0
    %1859 = vmatpush1.bf16.msra.mxu0 %v1760
    %1860 = vmatprep.subr.bf16.mxu0 0
    %1861 = vmatpush1.bf16.msra.mxu0 %v1761
    %1862 = vmatprep.subr.bf16.mxu0 0
    %1863 = vmatpush1.bf16.msra.mxu0 %v1762
    %1864 = vmatprep.subr.bf16.mxu0 0
    %1865 = vmatpush1.bf16.msra.mxu0 %v1763
    %1866 = vmatprep.subr.bf16.mxu0 0
    %1867 = vmatpush1.bf16.msra.mxu0 %v1764
    %1868 = vmatprep.subr.bf16.mxu0 0
    %1869 = vmatpush1.bf16.msra.mxu0 %v1765
    %1870 = vmatprep.mubr.bf16.mxu0 %v1534
    %1871 = vmatmul.mubr.bf16.gmra.mrb[0].mxu0 %v1533
    %v1872 = vpop.f32.mrb[0].mxu0
    %v1873 = vadd.f32 %v1833, %v1872
    %v1874 = vpop.f32.mrb[0].mxu0
    %v1875 = vpop.f32.mrb[0].mxu0
    %v1876 = vpop.f32.mrb[0].mxu0
    %1877 = vdwg.mxu0
    %1878 = vst [vmem:[#allocation8] sm:$0xff] %v1873
    // Predicated region
    $region42: #{retarget_net_forward.1} parent=1 // pred_check
      _
    $region43: #{retarget_net_forward.1} parent=1 // pred_check_branch
      %1880 = sbr.rel (0) target = $region45
    $region44: #{retarget_net_forward.1} parent=1 // pred_region
      %s1882 = ssub.s32 128, 128
      %1883 = vsyncadd [#allocation4], %s1882
      %s1885 = sshll.u32 [#allocation8], 4
      %s1886 = int_to_ptr.vmem [resolvable:$true] %s1885
      %1888 = dma.vmem_to_hbm [thread:$0]  %s1886, 128, %s7, [#allocation4]
    $region45: #{retarget_net_forward.1} parent=1 // pred_fallthru
      _
    // Predicated region
    $region46: #{retarget_net_forward.1} parent=1 // pred_check
      _
    $region47: #{retarget_net_forward.1} parent=1 // pred_check_branch
      %1890 = sbr.rel (0) target = $region49
    $region48: #{retarget_net_forward.1} parent=1 // pred_region
      %1891 = dma.done [#allocation4], 128
    $region49: #{retarget_net_forward.1} parent=1 // pred_fallthru
      _
    %1892 = vsyncpa [#allocation3], 1
    %1893 = vsyncpa [#allocation6], 1
    %1894 = vsyncpa [#allocation4], 1

</llo_original>
